<compile_context>
chip_gen: v5e
topology: v5e:2x2
jax: 0.10.0
libtpu: 0.0.40
codegen_flags: <defaults>
</compile_context>

<pallas_src>
import functools
import math

import jax
import jax.numpy as jnp
from jax.experimental import pallas as pl
from jax.experimental.pallas import tpu as pltpu

# ---------------- config (small, structurally faithful to BERT) ----------------
VOCAB = 1000
MAX_POS = 64
TYPE_VOCAB = 2
HIDDEN = 128
NUM_HEADS = 4
HEAD_DIM = HIDDEN // NUM_HEADS
INTERMEDIATE = 256
NUM_LAYERS = 2
NUM_CLASSES = 2
LN_EPS = 1e-12

BATCH = 2
SEQ = 8


# ---------------------------- helpers -------------------------------------------
def _gelu_f32(x):
    # TODO(synk): HF BERT uses exact erf-GELU; tanh-approximate GELU used here.
    return 0.5 * x * (1.0 + jnp.tanh(0.7978845608028654 * (x + 0.044715 * x * x * x)))


def _layernorm_f32(y, gamma, beta, eps):
    mu = jnp.mean(y, axis=-1, keepdims=True)
    var = jnp.mean((y - mu) ** 2, axis=-1, keepdims=True)
    return (y - mu) * jax.lax.rsqrt(var + eps) * gamma + beta


# ---------------------------- Pallas kernels ------------------------------------
def _ln_kernel(x_ref, g_ref, b_ref, o_ref, *, eps):
    x = x_ref[...]
    o_ref[...] = _layernorm_f32(x, g_ref[...], b_ref[...], eps).astype(o_ref.dtype)


def layernorm(x, gamma, beta, eps=LN_EPS):
    """LayerNorm over the last axis. x: (M, H) f32. Single grid step (M is tiny)."""
    M, H = x.shape
    return pl.pallas_call(
        functools.partial(_ln_kernel, eps=eps),
        out_shape=jax.ShapeDtypeStruct((M, H), x.dtype),
        grid=(1,),
        in_specs=[
            pl.BlockSpec((M, H), lambda i: (0, 0)),
            pl.BlockSpec((1, H), lambda i: (0, 0)),
            pl.BlockSpec((1, H), lambda i: (0, 0)),
        ],
        out_specs=pl.BlockSpec((M, H), lambda i: (0, 0)),
        compiler_params=pltpu.CompilerParams(dimension_semantics=("arbitrary",)),
    )(x, gamma.reshape(1, H), beta.reshape(1, H))


def _attn_block_kernel(h_ref, wqkv_ref, bqkv_ref, wo_ref, bo_ref, g_ref, beta_ref,
                       mask_ref, o_ref, *, num_heads, head_dim, eps):
    """Fused: QKV proj -> per-head masked SDPA -> merge -> out proj -> +res -> LN.

    One grid step == one batch element: h_ref is (S, H).
    """
    f32 = jnp.float32
    bf16 = jnp.bfloat16
    hdim = num_heads * head_dim
    scale = 1.0 / math.sqrt(head_dim)

    h = h_ref[...]                                                       # (S, H) f32
    qkv = jnp.dot(h.astype(bf16), wqkv_ref[...],
                  preferred_element_type=f32) + bqkv_ref[...]            # (S, 3H) f32
    q = qkv[:, :hdim].astype(bf16)
    k = qkv[:, hdim:2 * hdim].astype(bf16)
    v = qkv[:, 2 * hdim:].astype(bf16)

    bias = mask_ref[0]                                                   # (1, S) f32

    ctx_heads = []
    for hh in range(num_heads):                                          # unrolled, NH=4
        sl = slice(hh * head_dim, (hh + 1) * head_dim)
        q_h, k_h, v_h = q[:, sl], k[:, sl], v[:, sl]                     # (S, DH) bf16
        s = jnp.dot(q_h, k_h.T, preferred_element_type=f32) * scale + bias
        m = jnp.max(s, axis=-1, keepdims=True)
        p = jnp.exp(s - m)
        l = jnp.sum(p, axis=-1, keepdims=True)
        p = p * pl.reciprocal(l, approx=True)                            # EUP, not VPU div
        ctx_heads.append(jnp.dot(p.astype(bf16), v_h,
                                 preferred_element_type=f32))            # (S, DH) f32
    ctx = jnp.concatenate(ctx_heads, axis=-1)                            # (S, H) f32

    attn = jnp.dot(ctx.astype(bf16), wo_ref[...],
                   preferred_element_type=f32) + bo_ref[...]
    y = attn + h
    o_ref[...] = _layernorm_f32(y, g_ref[...], beta_ref[...], eps).astype(o_ref.dtype)


def attention_block(h, wqkv, bqkv, wo, bo, ln_g, ln_b, mask_bias, *, B, S):
    """h: (B*S, H) f32; wqkv: (H, 3H) bf16; wo: (H, H) bf16; mask_bias: (B, 1, S) f32."""
    M, H = h.shape
    H3 = wqkv.shape[1]
    return pl.pallas_call(
        functools.partial(_attn_block_kernel, num_heads=NUM_HEADS,
                          head_dim=HEAD_DIM, eps=LN_EPS),
        out_shape=jax.ShapeDtypeStruct((M, H), h.dtype),
        grid=(B,),
        in_specs=[
            pl.BlockSpec((S, H), lambda b: (b, 0)),
            pl.BlockSpec((H, H3), lambda b: (0, 0)),
            pl.BlockSpec((1, H3), lambda b: (0, 0)),
            pl.BlockSpec((H, H), lambda b: (0, 0)),
            pl.BlockSpec((1, H), lambda b: (0, 0)),
            pl.BlockSpec((1, H), lambda b: (0, 0)),
            pl.BlockSpec((1, H), lambda b: (0, 0)),
            pl.BlockSpec((1, 1, S), lambda b: (b, 0, 0)),
        ],
        out_specs=pl.BlockSpec((S, H), lambda b: (b, 0)),
        # Toy size: don't rely on megacore for 2 tiny steps.
        compiler_params=pltpu.CompilerParams(dimension_semantics=("arbitrary",)),
    )(h, wqkv, bqkv.reshape(1, H3), wo, bo.reshape(1, H),
      ln_g.reshape(1, H), ln_b.reshape(1, H), mask_bias)


def _ffn_block_kernel(h_ref, w1_ref, b1_ref, w2_ref, b2_ref, g_ref, beta_ref, o_ref,
                      *, eps):
    """Fused: GELU(h @ w1 + b1) @ w2 + b2 -> +residual -> LayerNorm."""
    f32 = jnp.float32
    bf16 = jnp.bfloat16
    h = h_ref[...]                                                       # (M, H) f32
    t = jnp.dot(h.astype(bf16), w1_ref[...],
                preferred_element_type=f32) + b1_ref[...]                # (M, I) f32
    t = _gelu_f32(t)
    y = jnp.dot(t.astype(bf16), w2_ref[...],
                preferred_element_type=f32) + b2_ref[...] + h
    o_ref[...] = _layernorm_f32(y, g_ref[...], beta_ref[...], eps).astype(o_ref.dtype)


def ffn_block(h, w1, b1, w2, b2, ln_g, ln_b):
    """h: (M, H) f32; w1: (H, I) bf16; w2: (I, H) bf16. Single grid step (M=16).

    At bert-base scale, tile M (multiples of 128/256) and, on v7x (64 MiB VMEM),
    tile the intermediate N dimension instead of passing whole weights per block.
    """
    M, H = h.shape
    I = w1.shape[1]
    return pl.pallas_call(
        functools.partial(_ffn_block_kernel, eps=LN_EPS),
        out_shape=jax.ShapeDtypeStruct((M, H), h.dtype),
        grid=(1,),
        in_specs=[
            pl.BlockSpec((M, H), lambda i: (0, 0)),
            pl.BlockSpec((H, I), lambda i: (0, 0)),
            pl.BlockSpec((1, I), lambda i: (0, 0)),
            pl.BlockSpec((I, H), lambda i: (0, 0)),
            pl.BlockSpec((1, H), lambda i: (0, 0)),
            pl.BlockSpec((1, H), lambda i: (0, 0)),
            pl.BlockSpec((1, H), lambda i: (0, 0)),
        ],
        out_specs=pl.BlockSpec((M, H), lambda i: (0, 0)),
        compiler_params=pltpu.CompilerParams(dimension_semantics=("arbitrary",)),
    )(h, w1, b1.reshape(1, I), w2, b2.reshape(1, H),
      ln_g.reshape(1, H), ln_b.reshape(1, H))


# ---------------------------- parameters ----------------------------------------
def _normal(key, shape, scale=0.02, dtype=jnp.float32):
    return (scale * jax.random.normal(key, shape, dtype=jnp.float32)).astype(dtype)


def init_params(key):
    keys = iter(jax.random.split(key, 8 + NUM_LAYERS * 8))
    p = {
        "word_emb": _normal(next(keys), (VOCAB, HIDDEN)),
        "pos_emb": _normal(next(keys), (MAX_POS, HIDDEN)),
        "type_emb": _normal(next(keys), (TYPE_VOCAB, HIDDEN)),
        "emb_ln_g": jnp.ones((HIDDEN,), jnp.float32),
        "emb_ln_b": jnp.zeros((HIDDEN,), jnp.float32),
        "pool_w": _normal(next(keys), (HIDDEN, HIDDEN)),
        "pool_b": jnp.zeros((HIDDEN,), jnp.float32),
        "fc_w": _normal(next(keys), (HIDDEN, NUM_CLASSES)),
        "fc_b": jnp.zeros((NUM_CLASSES,), jnp.float32),
        "layers": [],
    }
    for _ in range(NUM_LAYERS):
        lp = {
            # fused QKV weight, stored bf16 (MXU-native operands, f32 accumulation)
            "wqkv": _normal(next(keys), (HIDDEN, 3 * HIDDEN), dtype=jnp.bfloat16),
            "bqkv": jnp.zeros((3 * HIDDEN,), jnp.float32),
            "wo": _normal(next(keys), (HIDDEN, HIDDEN), dtype=jnp.bfloat16),
            "bo": jnp.zeros((HIDDEN,), jnp.float32),
            "ln1_g": jnp.ones((HIDDEN,), jnp.float32),
            "ln1_b": jnp.zeros((HIDDEN,), jnp.float32),
            "w1": _normal(next(keys), (HIDDEN, INTERMEDIATE), dtype=jnp.bfloat16),
            "b1": jnp.zeros((INTERMEDIATE,), jnp.float32),
            "w2": _normal(next(keys), (INTERMEDIATE, HIDDEN), dtype=jnp.bfloat16),
            "b2": jnp.zeros((HIDDEN,), jnp.float32),
            "ln2_g": jnp.ones((HIDDEN,), jnp.float32),
            "ln2_b": jnp.zeros((HIDDEN,), jnp.float32),
        }
        p["layers"].append(lp)
    return p


# ---------------------------- forward pass ---------------------------------------
def bert_model_forward(params, x_ids, mask):
    """x_ids: (B, S) int32 token ids; mask: (B, S) attention mask (1 = keep)."""
    B, S = x_ids.shape
    # embeddings (gather is plain-JAX glue; LN is a kernel). token_type_ids == 0.
    emb = (params["word_emb"][x_ids]
           + params["pos_emb"][:S][None, :, :]
           + params["type_emb"][0][None, None, :])
    h = layernorm(emb.reshape(B * S, HIDDEN),
                  params["emb_ln_g"], params["emb_ln_b"])

    # HF-style extended attention mask: 0 where attend, -1e4 where masked (f32).
    mask_bias = ((1.0 - mask.astype(jnp.float32)) * -10000.0).reshape(B, 1, S)

    for lp in params["layers"]:
        h = attention_block(h, lp["wqkv"], lp["bqkv"], lp["wo"], lp["bo"],
                            lp["ln1_g"], lp["ln1_b"], mask_bias, B=B, S=S)
        h = ffn_block(h, lp["w1"], lp["b1"], lp["w2"], lp["b2"],
                      lp["ln2_g"], lp["ln2_b"])

    # pooler (dense + tanh on [CLS]) + 2-class head: plain JAX — the (B, 2)
    # output is lane-sparse and a pallas_call here is pure launch overhead.
    cls = h.reshape(B, S, HIDDEN)[:, 0, :]
    pooled = jnp.tanh(cls @ params["pool_w"] + params["pool_b"])
    logits = pooled @ params["fc_w"] + params["fc_b"]
    return logits


# ------------------------------- main ---------------------------------------------
if __name__ == "__main__":
    key = jax.random.PRNGKey(0)
    k_param, k_ids = jax.random.split(key)

    params = init_params(k_param)
    x = jax.random.randint(k_ids, (BATCH, SEQ), 0, VOCAB, dtype=jnp.int32)
    mask = jnp.array([[1, 1, 1, 1, 1, 1, 1, 1],
                      [1, 1, 1, 1, 1, 0, 0, 0]], dtype=jnp.int32)

    forward = jax.jit(bert_model_forward)
    logits = forward(params, x, mask)
    logits = jax.block_until_ready(logits)
    assert logits.shape == (BATCH, NUM_CLASSES)
    assert bool(jnp.all(jnp.isfinite(logits)))
    print("KERNEL_OK")
</pallas_src>

<mosaic_0001>
module attributes {stable_mosaic.version = 11 : i64} {
  func.func @_ln_kernel(%arg0: i32, %arg1: memref<16x128xf32, #tpu.memory_space<vmem>>, %arg2: memref<1x128xf32, #tpu.memory_space<vmem>>, %arg3: memref<1x128xf32, #tpu.memory_space<vmem>>, %arg4: memref<16x128xf32, #tpu.memory_space<vmem>>) attributes {dimension_semantics = [#tpu.dimension_semantics<arbitrary>], iteration_bounds = array<i64: 1>, scalar_prefetch = 0 : i64, scratch_operands = 0 : i64, tpu.core_type = #tpu.core_type<tc>, window_params = [{pipeline_mode = #tpu.pipeline_mode<synchronous>, transform_indices = @transform_0, window_bounds = array<i64: 16, 128>}, {pipeline_mode = #tpu.pipeline_mode<synchronous>, transform_indices = @transform_1, window_bounds = array<i64: 1, 128>}, {pipeline_mode = #tpu.pipeline_mode<synchronous>, transform_indices = @transform_2, window_bounds = array<i64: 1, 128>}, {pipeline_mode = #tpu.pipeline_mode<synchronous>, transform_indices = @transform_3, window_bounds = array<i64: 16, 128>}]} {
    %c0 = arith.constant 0 : index
    %c0_0 = arith.constant 0 : index
    %0 = vector.load %arg1[%c0, %c0_0] : memref<16x128xf32, #tpu.memory_space<vmem>>, vector<16x128xf32>
    %c0_1 = arith.constant 0 : index
    %c0_2 = arith.constant 0 : index
    %1 = vector.load %arg2[%c0_1, %c0_2] : memref<1x128xf32, #tpu.memory_space<vmem>>, vector<1x128xf32>
    %c0_3 = arith.constant 0 : index
    %c0_4 = arith.constant 0 : index
    %2 = vector.load %arg3[%c0_3, %c0_4] : memref<1x128xf32, #tpu.memory_space<vmem>>, vector<1x128xf32>
    %cst = arith.constant dense<0.000000e+00> : vector<16xf32>
    %3 = vector.multi_reduction <add>, %0, %cst [1] : vector<16x128xf32> to vector<16xf32>
    %4 = vector.shape_cast %3 : vector<16xf32> to vector<16x1xf32>
    %cst_5 = arith.constant 1.280000e+02 : f32
    %5 = vector.broadcast %cst_5 : f32 to vector<16x1xf32>
    %6 = arith.divf %4, %5 : vector<16x1xf32>
    %7 = vector.broadcast %6 : vector<16x1xf32> to vector<16x128xf32>
    %8 = arith.subf %0, %7 : vector<16x128xf32>
    %9 = arith.mulf %8, %8 : vector<16x128xf32>
    %cst_6 = arith.constant dense<0.000000e+00> : vector<16xf32>
    %10 = vector.multi_reduction <add>, %9, %cst_6 [1] : vector<16x128xf32> to vector<16xf32>
    %11 = vector.shape_cast %10 : vector<16xf32> to vector<16x1xf32>
    %cst_7 = arith.constant 1.280000e+02 : f32
    %12 = vector.broadcast %cst_7 : f32 to vector<16x1xf32>
    %13 = arith.divf %11, %12 : vector<16x1xf32>
    %14 = vector.broadcast %6 : vector<16x1xf32> to vector<16x128xf32>
    %15 = arith.subf %0, %14 : vector<16x128xf32>
    %cst_8 = arith.constant 9.99999996E-13 : f32
    %16 = vector.broadcast %cst_8 : f32 to vector<16x1xf32>
    %17 = arith.addf %13, %16 : vector<16x1xf32>
    %18 = math.rsqrt %17 : vector<16x1xf32>
    %19 = vector.broadcast %18 : vector<16x1xf32> to vector<16x128xf32>
    %20 = arith.mulf %15, %19 : vector<16x128xf32>
    %21 = vector.broadcast %1 : vector<1x128xf32> to vector<16x128xf32>
    %22 = arith.mulf %20, %21 : vector<16x128xf32>
    %23 = vector.broadcast %2 : vector<1x128xf32> to vector<16x128xf32>
    %24 = arith.addf %22, %23 : vector<16x128xf32>
    %c0_9 = arith.constant 0 : index
    %c0_10 = arith.constant 0 : index
    %25 = vector.load %arg4[%c0_9, %c0_10] : memref<16x128xf32, #tpu.memory_space<vmem>>, vector<16x128xf32>
    tpu.vector_store %arg4[%c0_9, %c0_10], %24 {strides = array<i32>} : memref<16x128xf32, #tpu.memory_space<vmem>>, vector<16x128xf32>,
    return
  }
  func.func @transform_0(%arg0: i32) -> (i32, i32) {
    %c0_i32 = arith.constant 0 : i32
    %c0_i32_0 = arith.constant 0 : i32
    %c0_i32_1 = arith.constant 0 : i32
    return %c0_i32, %c0_i32_0 : i32, i32
  }
  func.func @transform_1(%arg0: i32) -> (i32, i32) {
    %c0_i32 = arith.constant 0 : i32
    %c0_i32_0 = arith.constant 0 : i32
    %c0_i32_1 = arith.constant 0 : i32
    return %c0_i32, %c0_i32_0 : i32, i32
  }
  func.func @transform_2(%arg0: i32) -> (i32, i32) {
    %c0_i32 = arith.constant 0 : i32
    %c0_i32_0 = arith.constant 0 : i32
    %c0_i32_1 = arith.constant 0 : i32
    return %c0_i32, %c0_i32_0 : i32, i32
  }
  func.func @transform_3(%arg0: i32) -> (i32, i32) {
    %c0_i32 = arith.constant 0 : i32
    %c0_i32_0 = arith.constant 0 : i32
    %c0_i32_1 = arith.constant 0 : i32
    return %c0_i32, %c0_i32_0 : i32, i32
  }
}

module attributes {stable_mosaic.version = 11 : i64} {
  func.func @_ffn_block_kernel(%arg0: i32, %arg1: memref<16x128xf32, #tpu.memory_space<vmem>>, %arg2: memref<128x256xbf16, #tpu.memory_space<vmem>>, %arg3: memref<1x256xf32, #tpu.memory_space<vmem>>, %arg4: memref<256x128xbf16, #tpu.memory_space<vmem>>, %arg5: memref<1x128xf32, #tpu.memory_space<vmem>>, %arg6: memref<1x128xf32, #tpu.memory_space<vmem>>, %arg7: memref<1x128xf32, #tpu.memory_space<vmem>>, %arg8: memref<16x128xf32, #tpu.memory_space<vmem>>) attributes {dimension_semantics = [#tpu.dimension_semantics<arbitrary>], iteration_bounds = array<i64: 1>, scalar_prefetch = 0 : i64, scratch_operands = 0 : i64, tpu.core_type = #tpu.core_type<tc>, window_params = [{pipeline_mode = #tpu.pipeline_mode<synchronous>, transform_indices = @transform_0, window_bounds = array<i64: 16, 128>}, {pipeline_mode = #tpu.pipeline_mode<synchronous>, transform_indices = @transform_1, window_bounds = array<i64: 128, 256>}, {pipeline_mode = #tpu.pipeline_mode<synchronous>, transform_indices = @transform_2, window_bounds = array<i64: 1, 256>}, {pipeline_mode = #tpu.pipeline_mode<synchronous>, transform_indices = @transform_3, window_bounds = array<i64: 256, 128>}, {pipeline_mode = #tpu.pipeline_mode<synchronous>, transform_indices = @transform_4, window_bounds = array<i64: 1, 128>}, {pipeline_mode = #tpu.pipeline_mode<synchronous>, transform_indices = @transform_5, window_bounds = array<i64: 1, 128>}, {pipeline_mode = #tpu.pipeline_mode<synchronous>, transform_indices = @transform_6, window_bounds = array<i64: 1, 128>}, {pipeline_mode = #tpu.pipeline_mode<synchronous>, transform_indices = @transform_7, window_bounds = array<i64: 16, 128>}]} {
    %c0 = arith.constant 0 : index
    %c0_0 = arith.constant 0 : index
    %0 = vector.load %arg1[%c0, %c0_0] : memref<16x128xf32, #tpu.memory_space<vmem>>, vector<16x128xf32>
    %1 = arith.truncf %0 : vector<16x128xf32> to vector<16x128xbf16>
    %c0_1 = arith.constant 0 : index
    %c0_2 = arith.constant 0 : index
    %2 = vector.load %arg2[%c0_1, %c0_2] : memref<128x256xbf16, #tpu.memory_space<vmem>>, vector<128x256xbf16>
    %cst = arith.constant dense<0.000000e+00> : vector<16x256xf32>
    %3 = tpu.matmul %1, %2, %cst {dimension_numbers = #tpu.dot_dimension_numbers<[1], [0], [0], [1], [0, 0, 1, 1], [], []>} : vector<16x128xbf16>, vector<128x256xbf16>, vector<16x256xf32> -> vector<16x256xf32>
    %c0_3 = arith.constant 0 : index
    %c0_4 = arith.constant 0 : index
    %4 = vector.load %arg3[%c0_3, %c0_4] : memref<1x256xf32, #tpu.memory_space<vmem>>, vector<1x256xf32>
    %5 = vector.broadcast %4 : vector<1x256xf32> to vector<16x256xf32>
    %6 = arith.addf %3, %5 : vector<16x256xf32>
    %cst_5 = arith.constant 5.000000e-01 : f32
    %7 = vector.broadcast %cst_5 : f32 to vector<16x256xf32>
    %8 = arith.mulf %7, %6 : vector<16x256xf32>
    %cst_6 = arith.constant 4.471500e-02 : f32
    %9 = vector.broadcast %cst_6 : f32 to vector<16x256xf32>
    %10 = arith.mulf %9, %6 : vector<16x256xf32>
    %11 = arith.mulf %10, %6 : vector<16x256xf32>
    %12 = arith.mulf %11, %6 : vector<16x256xf32>
    %13 = arith.addf %6, %12 : vector<16x256xf32>
    %cst_7 = arith.constant 0.797884583 : f32
    %14 = vector.broadcast %cst_7 : f32 to vector<16x256xf32>
    %15 = arith.mulf %14, %13 : vector<16x256xf32>
    %16 = math.tanh %15 : vector<16x256xf32>
    %cst_8 = arith.constant 1.000000e+00 : f32
    %17 = vector.broadcast %cst_8 : f32 to vector<16x256xf32>
    %18 = arith.addf %17, %16 : vector<16x256xf32>
    %19 = arith.mulf %8, %18 : vector<16x256xf32>
    %20 = arith.truncf %19 : vector<16x256xf32> to vector<16x256xbf16>
    %c0_9 = arith.constant 0 : index
    %c0_10 = arith.constant 0 : index
    %21 = vector.load %arg4[%c0_9, %c0_10] : memref<256x128xbf16, #tpu.memory_space<vmem>>, vector<256x128xbf16>
    %cst_11 = arith.constant dense<0.000000e+00> : vector<16x128xf32>
    %22 = tpu.matmul %20, %21, %cst_11 {dimension_numbers = #tpu.dot_dimension_numbers<[1], [0], [0], [1], [0, 0, 1, 1], [], []>} : vector<16x256xbf16>, vector<256x128xbf16>, vector<16x128xf32> -> vector<16x128xf32>
    %c0_12 = arith.constant 0 : index
    %c0_13 = arith.constant 0 : index
    %23 = vector.load %arg5[%c0_12, %c0_13] : memref<1x128xf32, #tpu.memory_space<vmem>>, vector<1x128xf32>
    %24 = vector.broadcast %23 : vector<1x128xf32> to vector<16x128xf32>
    %25 = arith.addf %22, %24 : vector<16x128xf32>
    %26 = arith.addf %25, %0 : vector<16x128xf32>
    %c0_14 = arith.constant 0 : index
    %c0_15 = arith.constant 0 : index
    %27 = vector.load %arg6[%c0_14, %c0_15] : memref<1x128xf32, #tpu.memory_space<vmem>>, vector<1x128xf32>
    %c0_16 = arith.constant 0 : index
    %c0_17 = arith.constant 0 : index
    %28 = vector.load %arg7[%c0_16, %c0_17] : memref<1x128xf32, #tpu.memory_space<vmem>>, vector<1x128xf32>
    %cst_18 = arith.constant dense<0.000000e+00> : vector<16xf32>
    %29 = vector.multi_reduction <add>, %26, %cst_18 [1] : vector<16x128xf32> to vector<16xf32>
    %30 = vector.shape_cast %29 : vector<16xf32> to vector<16x1xf32>
    %cst_19 = arith.constant 1.280000e+02 : f32
    %31 = vector.broadcast %cst_19 : f32 to vector<16x1xf32>
    %32 = arith.divf %30, %31 : vector<16x1xf32>
    %33 = vector.broadcast %32 : vector<16x1xf32> to vector<16x128xf32>
    %34 = arith.subf %26, %33 : vector<16x128xf32>
    %35 = arith.mulf %34, %34 : vector<16x128xf32>
    %cst_20 = arith.constant dense<0.000000e+00> : vector<16xf32>
    %36 = vector.multi_reduction <add>, %35, %cst_20 [1] : vector<16x128xf32> to vector<16xf32>
    %37 = vector.shape_cast %36 : vector<16xf32> to vector<16x1xf32>
    %cst_21 = arith.constant 1.280000e+02 : f32
    %38 = vector.broadcast %cst_21 : f32 to vector<16x1xf32>
    %39 = arith.divf %37, %38 : vector<16x1xf32>
    %40 = vector.broadcast %32 : vector<16x1xf32> to vector<16x128xf32>
    %41 = arith.subf %26, %40 : vector<16x128xf32>
    %cst_22 = arith.constant 9.99999996E-13 : f32
    %42 = vector.broadcast %cst_22 : f32 to vector<16x1xf32>
    %43 = arith.addf %39, %42 : vector<16x1xf32>
    %44 = math.rsqrt %43 : vector<16x1xf32>
    %45 = vector.broadcast %44 : vector<16x1xf32> to vector<16x128xf32>
    %46 = arith.mulf %41, %45 : vector<16x128xf32>
    %47 = vector.broadcast %27 : vector<1x128xf32> to vector<16x128xf32>
    %48 = arith.mulf %46, %47 : vector<16x128xf32>
    %49 = vector.broadcast %28 : vector<1x128xf32> to vector<16x128xf32>
    %50 = arith.addf %48, %49 : vector<16x128xf32>
    %c0_23 = arith.constant 0 : index
    %c0_24 = arith.constant 0 : index
    %51 = vector.load %arg8[%c0_23, %c0_24] : memref<16x128xf32, #tpu.memory_space<vmem>>, vector<16x128xf32>
    tpu.vector_store %arg8[%c0_23, %c0_24], %50 {strides = array<i32>} : memref<16x128xf32, #tpu.memory_space<vmem>>, vector<16x128xf32>,
    return
  }
  func.func @transform_0(%arg0: i32) -> (i32, i32) {
    %c0_i32 = arith.constant 0 : i32
    %c0_i32_0 = arith.constant 0 : i32
    %c0_i32_1 = arith.constant 0 : i32
    return %c0_i32, %c0_i32_0 : i32, i32
  }
  func.func @transform_1(%arg0: i32) -> (i32, i32) {
    %c0_i32 = arith.constant 0 : i32
    %c0_i32_0 = arith.constant 0 : i32
    %c0_i32_1 = arith.constant 0 : i32
    return %c0_i32, %c0_i32_0 : i32, i32
  }
  func.func @transform_2(%arg0: i32) -> (i32, i32) {
    %c0_i32 = arith.constant 0 : i32
    %c0_i32_0 = arith.constant 0 : i32
    %c0_i32_1 = arith.constant 0 : i32
    return %c0_i32, %c0_i32_0 : i32, i32
  }
  func.func @transform_3(%arg0: i32) -> (i32, i32) {
    %c0_i32 = arith.constant 0 : i32
    %c0_i32_0 = arith.constant 0 : i32
    %c0_i32_1 = arith.constant 0 : i32
    return %c0_i32, %c0_i32_0 : i32, i32
  }
  func.func @transform_4(%arg0: i32) -> (i32, i32) {
    %c0_i32 = arith.constant 0 : i32
    %c0_i32_0 = arith.constant 0 : i32
    %c0_i32_1 = arith.constant 0 : i32
    return %c0_i32, %c0_i32_0 : i32, i32
  }
  func.func @transform_5(%arg0: i32) -> (i32, i32) {
    %c0_i32 = arith.constant 0 : i32
    %c0_i32_0 = arith.constant 0 : i32
    %c0_i32_1 = arith.constant 0 : i32
    return %c0_i32, %c0_i32_0 : i32, i32
  }
  func.func @transform_6(%arg0: i32) -> (i32, i32) {
    %c0_i32 = arith.constant 0 : i32
    %c0_i32_0 = arith.constant 0 : i32
    %c0_i32_1 = arith.constant 0 : i32
    return %c0_i32, %c0_i32_0 : i32, i32
  }
  func.func @transform_7(%arg0: i32) -> (i32, i32) {
    %c0_i32 = arith.constant 0 : i32
    %c0_i32_0 = arith.constant 0 : i32
    %c0_i32_1 = arith.constant 0 : i32
    return %c0_i32, %c0_i32_0 : i32, i32
  }
}

module attributes {stable_mosaic.version = 11 : i64} {
  func.func @_attn_block_kernel(%arg0: i32, %arg1: memref<8x128xf32, #tpu.memory_space<vmem>>, %arg2: memref<128x384xbf16, #tpu.memory_space<vmem>>, %arg3: memref<1x384xf32, #tpu.memory_space<vmem>>, %arg4: memref<128x128xbf16, #tpu.memory_space<vmem>>, %arg5: memref<1x128xf32, #tpu.memory_space<vmem>>, %arg6: memref<1x128xf32, #tpu.memory_space<vmem>>, %arg7: memref<1x128xf32, #tpu.memory_space<vmem>>, %arg8: memref<1x1x8xf32, #tpu.memory_space<vmem>>, %arg9: memref<8x128xf32, #tpu.memory_space<vmem>>) attributes {dimension_semantics = [#tpu.dimension_semantics<arbitrary>], iteration_bounds = array<i64: 2>, scalar_prefetch = 0 : i64, scratch_operands = 0 : i64, tpu.core_type = #tpu.core_type<tc>, window_params = [{transform_indices = @transform_0, window_bounds = array<i64: 8, 128>}, {pipeline_mode = #tpu.pipeline_mode<synchronous>, transform_indices = @transform_1, window_bounds = array<i64: 128, 384>}, {pipeline_mode = #tpu.pipeline_mode<synchronous>, transform_indices = @transform_2, window_bounds = array<i64: 1, 384>}, {pipeline_mode = #tpu.pipeline_mode<synchronous>, transform_indices = @transform_3, window_bounds = array<i64: 128, 128>}, {pipeline_mode = #tpu.pipeline_mode<synchronous>, transform_indices = @transform_4, window_bounds = array<i64: 1, 128>}, {pipeline_mode = #tpu.pipeline_mode<synchronous>, transform_indices = @transform_5, window_bounds = array<i64: 1, 128>}, {pipeline_mode = #tpu.pipeline_mode<synchronous>, transform_indices = @transform_6, window_bounds = array<i64: 1, 128>}, {transform_indices = @transform_7, window_bounds = array<i64: 1, 1, 8>}, {transform_indices = @transform_8, window_bounds = array<i64: 8, 128>}]} {
    %c0 = arith.constant 0 : index
    %c0_0 = arith.constant 0 : index
    %0 = vector.load %arg1[%c0, %c0_0] : memref<8x128xf32, #tpu.memory_space<vmem>>, vector<8x128xf32>
    %1 = arith.truncf %0 : vector<8x128xf32> to vector<8x128xbf16>
    %c0_1 = arith.constant 0 : index
    %c0_2 = arith.constant 0 : index
    %2 = vector.load %arg2[%c0_1, %c0_2] : memref<128x384xbf16, #tpu.memory_space<vmem>>, vector<128x384xbf16>
    %cst = arith.constant dense<0.000000e+00> : vector<8x384xf32>
    %3 = tpu.matmul %1, %2, %cst {dimension_numbers = #tpu.dot_dimension_numbers<[1], [0], [0], [1], [0, 0, 1, 1], [], []>} : vector<8x128xbf16>, vector<128x384xbf16>, vector<8x384xf32> -> vector<8x384xf32>
    %c0_3 = arith.constant 0 : index
    %c0_4 = arith.constant 0 : index
    %4 = vector.load %arg3[%c0_3, %c0_4] : memref<1x384xf32, #tpu.memory_space<vmem>>, vector<1x384xf32>
    %5 = vector.broadcast %4 : vector<1x384xf32> to vector<8x384xf32>
    %6 = arith.addf %3, %5 : vector<8x384xf32>
    %7 = vector.extract_strided_slice %6 {offsets = [0, 0], sizes = [8, 128], strides = [1, 1]} : vector<8x384xf32> to vector<8x128xf32>
    %8 = arith.truncf %7 : vector<8x128xf32> to vector<8x128xbf16>
    %9 = vector.extract_strided_slice %6 {offsets = [0, 128], sizes = [8, 128], strides = [1, 1]} : vector<8x384xf32> to vector<8x128xf32>
    %10 = arith.truncf %9 : vector<8x128xf32> to vector<8x128xbf16>
    %11 = vector.extract_strided_slice %6 {offsets = [0, 256], sizes = [8, 128], strides = [1, 1]} : vector<8x384xf32> to vector<8x128xf32>
    %12 = arith.truncf %11 : vector<8x128xf32> to vector<8x128xbf16>
    %c0_5 = arith.constant 0 : index
    %c0_6 = arith.constant 0 : index
    %c0_7 = arith.constant 0 : index
    %13 = vector.load %arg8[%c0_5, %c0_6, %c0_7] : memref<1x1x8xf32, #tpu.memory_space<vmem>>, vector<1x1x8xf32>
    %14 = vector.shape_cast %13 : vector<1x1x8xf32> to vector<1x8xf32>
    %15 = vector.extract_strided_slice %8 {offsets = [0, 0], sizes = [8, 32], strides = [1, 1]} : vector<8x128xbf16> to vector<8x32xbf16>
    %16 = vector.extract_strided_slice %10 {offsets = [0, 0], sizes = [8, 32], strides = [1, 1]} : vector<8x128xbf16> to vector<8x32xbf16>
    %17 = vector.extract_strided_slice %12 {offsets = [0, 0], sizes = [8, 32], strides = [1, 1]} : vector<8x128xbf16> to vector<8x32xbf16>
    %18 = tpu.transpose %16, [1, 0] : vector<8x32xbf16> -> vector<32x8xbf16>
    %cst_8 = arith.constant dense<0.000000e+00> : vector<8x8xf32>
    %19 = tpu.matmul %15, %18, %cst_8 {dimension_numbers = #tpu.dot_dimension_numbers<[1], [0], [0], [1], [0, 0, 1, 1], [], []>} : vector<8x32xbf16>, vector<32x8xbf16>, vector<8x8xf32> -> vector<8x8xf32>
    %cst_9 = arith.constant 0.176776692 : f32
    %20 = vector.broadcast %cst_9 : f32 to vector<8x8xf32>
    %21 = arith.mulf %19, %20 : vector<8x8xf32>
    %22 = vector.broadcast %14 : vector<1x8xf32> to vector<8x8xf32>
    %23 = arith.addf %21, %22 : vector<8x8xf32>
    %cst_10 = arith.constant dense<0xFF800000> : vector<8xf32>
    %24 = vector.multi_reduction <maximumf>, %23, %cst_10 [1] : vector<8x8xf32> to vector<8xf32>
    %25 = vector.shape_cast %24 : vector<8xf32> to vector<8x1xf32>
    %26 = vector.broadcast %25 : vector<8x1xf32> to vector<8x8xf32>
    %27 = arith.subf %23, %26 : vector<8x8xf32>
    %28 = math.exp %27 : vector<8x8xf32>
    %cst_11 = arith.constant dense<0.000000e+00> : vector<8xf32>
    %29 = vector.multi_reduction <add>, %28, %cst_11 [1] : vector<8x8xf32> to vector<8xf32>
    %30 = vector.shape_cast %29 : vector<8xf32> to vector<8x1xf32>
    %31 = tpu.reciprocal %30 {approx = true} : vector<8x1xf32> -> vector<8x1xf32>
    %32 = vector.broadcast %31 : vector<8x1xf32> to vector<8x8xf32>
    %33 = arith.mulf %28, %32 : vector<8x8xf32>
    %34 = arith.truncf %33 : vector<8x8xf32> to vector<8x8xbf16>
    %cst_12 = arith.constant dense<0.000000e+00> : vector<8x32xf32>
    %35 = tpu.matmul %34, %17, %cst_12 {dimension_numbers = #tpu.dot_dimension_numbers<[1], [0], [0], [1], [0, 0, 1, 1], [], []>} : vector<8x8xbf16>, vector<8x32xbf16>, vector<8x32xf32> -> vector<8x32xf32>
    %36 = vector.extract_strided_slice %8 {offsets = [0, 32], sizes = [8, 32], strides = [1, 1]} : vector<8x128xbf16> to vector<8x32xbf16>
    %37 = vector.extract_strided_slice %10 {offsets = [0, 32], sizes = [8, 32], strides = [1, 1]} : vector<8x128xbf16> to vector<8x32xbf16>
    %38 = vector.extract_strided_slice %12 {offsets = [0, 32], sizes = [8, 32], strides = [1, 1]} : vector<8x128xbf16> to vector<8x32xbf16>
    %39 = tpu.transpose %37, [1, 0] : vector<8x32xbf16> -> vector<32x8xbf16>
    %cst_13 = arith.constant dense<0.000000e+00> : vector<8x8xf32>
    %40 = tpu.matmul %36, %39, %cst_13 {dimension_numbers = #tpu.dot_dimension_numbers<[1], [0], [0], [1], [0, 0, 1, 1], [], []>} : vector<8x32xbf16>, vector<32x8xbf16>, vector<8x8xf32> -> vector<8x8xf32>
    %cst_14 = arith.constant 0.176776692 : f32
    %41 = vector.broadcast %cst_14 : f32 to vector<8x8xf32>
    %42 = arith.mulf %40, %41 : vector<8x8xf32>
    %43 = vector.broadcast %14 : vector<1x8xf32> to vector<8x8xf32>
    %44 = arith.addf %42, %43 : vector<8x8xf32>
    %cst_15 = arith.constant dense<0xFF800000> : vector<8xf32>
    %45 = vector.multi_reduction <maximumf>, %44, %cst_15 [1] : vector<8x8xf32> to vector<8xf32>
    %46 = vector.shape_cast %45 : vector<8xf32> to vector<8x1xf32>
    %47 = vector.broadcast %46 : vector<8x1xf32> to vector<8x8xf32>
    %48 = arith.subf %44, %47 : vector<8x8xf32>
    %49 = math.exp %48 : vector<8x8xf32>
    %cst_16 = arith.constant dense<0.000000e+00> : vector<8xf32>
    %50 = vector.multi_reduction <add>, %49, %cst_16 [1] : vector<8x8xf32> to vector<8xf32>
    %51 = vector.shape_cast %50 : vector<8xf32> to vector<8x1xf32>
    %52 = tpu.reciprocal %51 {approx = true} : vector<8x1xf32> -> vector<8x1xf32>
    %53 = vector.broadcast %52 : vector<8x1xf32> to vector<8x8xf32>
    %54 = arith.mulf %49, %53 : vector<8x8xf32>
    %55 = arith.truncf %54 : vector<8x8xf32> to vector<8x8xbf16>
    %cst_17 = arith.constant dense<0.000000e+00> : vector<8x32xf32>
    %56 = tpu.matmul %55, %38, %cst_17 {dimension_numbers = #tpu.dot_dimension_numbers<[1], [0], [0], [1], [0, 0, 1, 1], [], []>} : vector<8x8xbf16>, vector<8x32xbf16>, vector<8x32xf32> -> vector<8x32xf32>
    %57 = vector.extract_strided_slice %8 {offsets = [0, 64], sizes = [8, 32], strides = [1, 1]} : vector<8x128xbf16> to vector<8x32xbf16>
    %58 = vector.extract_strided_slice %10 {offsets = [0, 64], sizes = [8, 32], strides = [1, 1]} : vector<8x128xbf16> to vector<8x32xbf16>
    %59 = vector.extract_strided_slice %12 {offsets = [0, 64], sizes = [8, 32], strides = [1, 1]} : vector<8x128xbf16> to vector<8x32xbf16>
    %60 = tpu.transpose %58, [1, 0] : vector<8x32xbf16> -> vector<32x8xbf16>
    %cst_18 = arith.constant dense<0.000000e+00> : vector<8x8xf32>
    %61 = tpu.matmul %57, %60, %cst_18 {dimension_numbers = #tpu.dot_dimension_numbers<[1], [0], [0], [1], [0, 0, 1, 1], [], []>} : vector<8x32xbf16>, vector<32x8xbf16>, vector<8x8xf32> -> vector<8x8xf32>
    %cst_19 = arith.constant 0.176776692 : f32
    %62 = vector.broadcast %cst_19 : f32 to vector<8x8xf32>
    %63 = arith.mulf %61, %62 : vector<8x8xf32>
    %64 = vector.broadcast %14 : vector<1x8xf32> to vector<8x8xf32>
    %65 = arith.addf %63, %64 : vector<8x8xf32>
    %cst_20 = arith.constant dense<0xFF800000> : vector<8xf32>
    %66 = vector.multi_reduction <maximumf>, %65, %cst_20 [1] : vector<8x8xf32> to vector<8xf32>
    %67 = vector.shape_cast %66 : vector<8xf32> to vector<8x1xf32>
    %68 = vector.broadcast %67 : vector<8x1xf32> to vector<8x8xf32>
    %69 = arith.subf %65, %68 : vector<8x8xf32>
    %70 = math.exp %69 : vector<8x8xf32>
    %cst_21 = arith.constant dense<0.000000e+00> : vector<8xf32>
    %71 = vector.multi_reduction <add>, %70, %cst_21 [1] : vector<8x8xf32> to vector<8xf32>
    %72 = vector.shape_cast %71 : vector<8xf32> to vector<8x1xf32>
    %73 = tpu.reciprocal %72 {approx = true} : vector<8x1xf32> -> vector<8x1xf32>
    %74 = vector.broadcast %73 : vector<8x1xf32> to vector<8x8xf32>
    %75 = arith.mulf %70, %74 : vector<8x8xf32>
    %76 = arith.truncf %75 : vector<8x8xf32> to vector<8x8xbf16>
    %cst_22 = arith.constant dense<0.000000e+00> : vector<8x32xf32>
    %77 = tpu.matmul %76, %59, %cst_22 {dimension_numbers = #tpu.dot_dimension_numbers<[1], [0], [0], [1], [0, 0, 1, 1], [], []>} : vector<8x8xbf16>, vector<8x32xbf16>, vector<8x32xf32> -> vector<8x32xf32>
    %78 = vector.extract_strided_slice %8 {offsets = [0, 96], sizes = [8, 32], strides = [1, 1]} : vector<8x128xbf16> to vector<8x32xbf16>
    %79 = vector.extract_strided_slice %10 {offsets = [0, 96], sizes = [8, 32], strides = [1, 1]} : vector<8x128xbf16> to vector<8x32xbf16>
    %80 = vector.extract_strided_slice %12 {offsets = [0, 96], sizes = [8, 32], strides = [1, 1]} : vector<8x128xbf16> to vector<8x32xbf16>
    %81 = tpu.transpose %79, [1, 0] : vector<8x32xbf16> -> vector<32x8xbf16>
    %cst_23 = arith.constant dense<0.000000e+00> : vector<8x8xf32>
    %82 = tpu.matmul %78, %81, %cst_23 {dimension_numbers = #tpu.dot_dimension_numbers<[1], [0], [0], [1], [0, 0, 1, 1], [], []>} : vector<8x32xbf16>, vector<32x8xbf16>, vector<8x8xf32> -> vector<8x8xf32>
    %cst_24 = arith.constant 0.176776692 : f32
    %83 = vector.broadcast %cst_24 : f32 to vector<8x8xf32>
    %84 = arith.mulf %82, %83 : vector<8x8xf32>
    %85 = vector.broadcast %14 : vector<1x8xf32> to vector<8x8xf32>
    %86 = arith.addf %84, %85 : vector<8x8xf32>
    %cst_25 = arith.constant dense<0xFF800000> : vector<8xf32>
    %87 = vector.multi_reduction <maximumf>, %86, %cst_25 [1] : vector<8x8xf32> to vector<8xf32>
    %88 = vector.shape_cast %87 : vector<8xf32> to vector<8x1xf32>
    %89 = vector.broadcast %88 : vector<8x1xf32> to vector<8x8xf32>
    %90 = arith.subf %86, %89 : vector<8x8xf32>
    %91 = math.exp %90 : vector<8x8xf32>
    %cst_26 = arith.constant dense<0.000000e+00> : vector<8xf32>
    %92 = vector.multi_reduction <add>, %91, %cst_26 [1] : vector<8x8xf32> to vector<8xf32>
    %93 = vector.shape_cast %92 : vector<8xf32> to vector<8x1xf32>
    %94 = tpu.reciprocal %93 {approx = true} : vector<8x1xf32> -> vector<8x1xf32>
    %95 = vector.broadcast %94 : vector<8x1xf32> to vector<8x8xf32>
    %96 = arith.mulf %91, %95 : vector<8x8xf32>
    %97 = arith.truncf %96 : vector<8x8xf32> to vector<8x8xbf16>
    %cst_27 = arith.constant dense<0.000000e+00> : vector<8x32xf32>
    %98 = tpu.matmul %97, %80, %cst_27 {dimension_numbers = #tpu.dot_dimension_numbers<[1], [0], [0], [1], [0, 0, 1, 1], [], []>} : vector<8x8xbf16>, vector<8x32xbf16>, vector<8x32xf32> -> vector<8x32xf32>
    %99 = tpu.concatenate %35, %56, %77, %98 in 1 : vector<8x32xf32>, vector<8x32xf32>, vector<8x32xf32>, vector<8x32xf32> -> vector<8x128xf32>
    %100 = arith.truncf %99 : vector<8x128xf32> to vector<8x128xbf16>
    %c0_28 = arith.constant 0 : index
    %c0_29 = arith.constant 0 : index
    %101 = vector.load %arg4[%c0_28, %c0_29] : memref<128x128xbf16, #tpu.memory_space<vmem>>, vector<128x128xbf16>
    %cst_30 = arith.constant dense<0.000000e+00> : vector<8x128xf32>
    %102 = tpu.matmul %100, %101, %cst_30 {dimension_numbers = #tpu.dot_dimension_numbers<[1], [0], [0], [1], [0, 0, 1, 1], [], []>} : vector<8x128xbf16>, vector<128x128xbf16>, vector<8x128xf32> -> vector<8x128xf32>
    %c0_31 = arith.constant 0 : index
    %c0_32 = arith.constant 0 : index
    %103 = vector.load %arg5[%c0_31, %c0_32] : memref<1x128xf32, #tpu.memory_space<vmem>>, vector<1x128xf32>
    %104 = vector.broadcast %103 : vector<1x128xf32> to vector<8x128xf32>
    %105 = arith.addf %102, %104 : vector<8x128xf32>
    %106 = arith.addf %105, %0 : vector<8x128xf32>
    %c0_33 = arith.constant 0 : index
    %c0_34 = arith.constant 0 : index
    %107 = vector.load %arg6[%c0_33, %c0_34] : memref<1x128xf32, #tpu.memory_space<vmem>>, vector<1x128xf32>
    %c0_35 = arith.constant 0 : index
    %c0_36 = arith.constant 0 : index
    %108 = vector.load %arg7[%c0_35, %c0_36] : memref<1x128xf32, #tpu.memory_space<vmem>>, vector<1x128xf32>
    %cst_37 = arith.constant dense<0.000000e+00> : vector<8xf32>
    %109 = vector.multi_reduction <add>, %106, %cst_37 [1] : vector<8x128xf32> to vector<8xf32>
    %110 = vector.shape_cast %109 : vector<8xf32> to vector<8x1xf32>
    %cst_38 = arith.constant 1.280000e+02 : f32
    %111 = vector.broadcast %cst_38 : f32 to vector<8x1xf32>
    %112 = arith.divf %110, %111 : vector<8x1xf32>
    %113 = vector.broadcast %112 : vector<8x1xf32> to vector<8x128xf32>
    %114 = arith.subf %106, %113 : vector<8x128xf32>
    %115 = arith.mulf %114, %114 : vector<8x128xf32>
    %cst_39 = arith.constant dense<0.000000e+00> : vector<8xf32>
    %116 = vector.multi_reduction <add>, %115, %cst_39 [1] : vector<8x128xf32> to vector<8xf32>
    %117 = vector.shape_cast %116 : vector<8xf32> to vector<8x1xf32>
    %cst_40 = arith.constant 1.280000e+02 : f32
    %118 = vector.broadcast %cst_40 : f32 to vector<8x1xf32>
    %119 = arith.divf %117, %118 : vector<8x1xf32>
    %120 = vector.broadcast %112 : vector<8x1xf32> to vector<8x128xf32>
    %121 = arith.subf %106, %120 : vector<8x128xf32>
    %cst_41 = arith.constant 9.99999996E-13 : f32
    %122 = vector.broadcast %cst_41 : f32 to vector<8x1xf32>
    %123 = arith.addf %119, %122 : vector<8x1xf32>
    %124 = math.rsqrt %123 : vector<8x1xf32>
    %125 = vector.broadcast %124 : vector<8x1xf32> to vector<8x128xf32>
    %126 = arith.mulf %121, %125 : vector<8x128xf32>
    %127 = vector.broadcast %107 : vector<1x128xf32> to vector<8x128xf32>
    %128 = arith.mulf %126, %127 : vector<8x128xf32>
    %129 = vector.broadcast %108 : vector<1x128xf32> to vector<8x128xf32>
    %130 = arith.addf %128, %129 : vector<8x128xf32>
    %c0_42 = arith.constant 0 : index
    %c0_43 = arith.constant 0 : index
    %131 = vector.load %arg9[%c0_42, %c0_43] : memref<8x128xf32, #tpu.memory_space<vmem>>, vector<8x128xf32>
    tpu.vector_store %arg9[%c0_42, %c0_43], %130 {strides = array<i32>} : memref<8x128xf32, #tpu.memory_space<vmem>>, vector<8x128xf32>,
    return
  }
  func.func @transform_0(%arg0: i32) -> (i32, i32) {
    %c0_i32 = arith.constant 0 : i32
    %c0_i32_0 = arith.constant 0 : i32
    return %arg0, %c0_i32 : i32, i32
  }
  func.func @transform_1(%arg0: i32) -> (i32, i32) {
    %c0_i32 = arith.constant 0 : i32
    %c0_i32_0 = arith.constant 0 : i32
    %c0_i32_1 = arith.constant 0 : i32
    return %c0_i32, %c0_i32_0 : i32, i32
  }
  func.func @transform_2(%arg0: i32) -> (i32, i32) {
    %c0_i32 = arith.constant 0 : i32
    %c0_i32_0 = arith.constant 0 : i32
    %c0_i32_1 = arith.constant 0 : i32
    return %c0_i32, %c0_i32_0 : i32, i32
  }
  func.func @transform_3(%arg0: i32) -> (i32, i32) {
    %c0_i32 = arith.constant 0 : i32
    %c0_i32_0 = arith.constant 0 : i32
    %c0_i32_1 = arith.constant 0 : i32
    return %c0_i32, %c0_i32_0 : i32, i32
  }
  func.func @transform_4(%arg0: i32) -> (i32, i32) {
    %c0_i32 = arith.constant 0 : i32
    %c0_i32_0 = arith.constant 0 : i32
    %c0_i32_1 = arith.constant 0 : i32
    return %c0_i32, %c0_i32_0 : i32, i32
  }
  func.func @transform_5(%arg0: i32) -> (i32, i32) {
    %c0_i32 = arith.constant 0 : i32
    %c0_i32_0 = arith.constant 0 : i32
    %c0_i32_1 = arith.constant 0 : i32
    return %c0_i32, %c0_i32_0 : i32, i32
  }
  func.func @transform_6(%arg0: i32) -> (i32, i32) {
    %c0_i32 = arith.constant 0 : i32
    %c0_i32_0 = arith.constant 0 : i32
    %c0_i32_1 = arith.constant 0 : i32
    return %c0_i32, %c0_i32_0 : i32, i32
  }
  func.func @transform_7(%arg0: i32) -> (i32, i32, i32) {
    %c0_i32 = arith.constant 0 : i32
    %c0_i32_0 = arith.constant 0 : i32
    %c0_i32_1 = arith.constant 0 : i32
    return %arg0, %c0_i32, %c0_i32_0 : i32, i32, i32
  }
  func.func @transform_8(%arg0: i32) -> (i32, i32) {
    %c0_i32 = arith.constant 0 : i32
    %c0_i32_0 = arith.constant 0 : i32
    return %arg0, %c0_i32 : i32, i32
  }
}

</mosaic_0001>

<llo_original>
// kernel: bert_model_forward.5
$region0: #{bert_model_forward.5}
  #allocation0 [shape = 'u32[]', space=smem, size = 0x4, offset = 0x4, fixed_abs, tag = 'smem constant byte address 0x4 - core index']
  #allocation1 [shape = 'u32[72,128]{1,0:T(1,128)}', space=vmem, size = 0x9000, scoped, tag = 'internal scratch']
  %s0 = inlined_call_operand.vmem [shape: f32[16,128], index: 0, kind: input, shape index: {}]
  %s1 = inlined_call_operand.vmem [shape: f32[1,128], index: 1, kind: input, shape index: {}]
  %s2 = inlined_call_operand.vmem [shape: f32[1,128], index: 2, kind: input, shape index: {}]
  %s3 = inlined_call_operand.vmem [shape: f32[16,128], index: 3, kind: output, shape index: {}]
  %s4 = sld [smem:[#allocation0]]
  $region22: #{bert_model_forward.5} parent=0
    _
  %s6 = ssub.s32 1, %s4
  %s7 = scalar_select 0, %s6, %s4
  // Predicated region
  $region2: #{bert_model_forward.5} parent=0 // pred_check
    _
  $region3: #{bert_model_forward.5} parent=0 // pred_check_branch
    %9 = sbr.rel (0) target = $region5
  $region4: #{bert_model_forward.5} parent=0 // pred_region
    _
  $region5: #{bert_model_forward.5} parent=0 // pred_fallthru
    _
  // Predicated region
  $region6: #{bert_model_forward.5} parent=0 // pred_check
    _
  $region7: #{bert_model_forward.5} parent=0 // pred_check_branch
    %11 = sbr.rel (0) target = $region9
  $region8: #{bert_model_forward.5} parent=0 // pred_region
    _
  $region9: #{bert_model_forward.5} parent=0 // pred_fallthru
    _
  // Predicated region
  $region10: #{bert_model_forward.5} parent=0 // pred_check
    _
  $region11: #{bert_model_forward.5} parent=0 // pred_check_branch
    %13 = sbr.rel (0) target = $region13
  $region12: #{bert_model_forward.5} parent=0 // pred_region
    _
  $region13: #{bert_model_forward.5} parent=0 // pred_fallthru
    _
  %v14 = vld [vmem:[%s0] sm:$0xff]
  %v15 = vld [vmem:[%s0 + $0x8] sm:$0xff]
  %v16 = vld [vmem:[%s1] sm:$0x1]
  %v17 = vld [vmem:[%s2] sm:$0x1]
  %18 = vadd.xlane.f32.xlu0 %v14
  %v19 = vpop.xlane.xlu0 %18
  %20 = vadd.xlane.f32.xlu0 %v15
  %v21 = vpop.xlane.xlu0 %20
  %v22 = vrcp.pop 128.0
  %v23 = vmul.f32 128.0, %v22
  %v24 = vsub.f32 1.0, %v23
  %v25 = vmul.f32 %v22, %v24
  %v26 = vadd.f32 %v22, %v25
  %vm27 = vweird.f32 %v22
  %v28 = vsel %vm27, %v22, %v26
  %v29 = vmul.f32 %v19, %v28
  %v30 = vmul.f32 %v21, %v28
  %v31 = vsub.f32 %v14, %v29
  %v32 = vsub.f32 %v15, %v30
  %v33 = vmul.f32 %v31, %v31
  %v34 = vmul.f32 %v32, %v32
  %35 = vadd.xlane.f32.xlu0 %v33
  %v36 = vpop.xlane.xlu0 %35
  %37 = vadd.xlane.f32.xlu0 %v34
  %v38 = vpop.xlane.xlu0 %37
  %v39 = vmul.f32 %v36, %v28
  %v40 = vmul.f32 %v38, %v28
  %v41 = vadd.f32 %v39, 1e-12
  %v42 = vadd.f32 %v40, 1e-12
  %v43 = vrsqrt.pop %v41
  %v44 = vmul.f32 %v43, %v41
  %v45 = vmul.f32 %v44, %v43
  %v46 = vmul.f32 0.5, %v45
  %v47 = vsub.f32 1.5, %v46
  %v48 = vmul.f32 %v43, %v47
  %vm49 = vweird.f32 %v41
  %vm50 = vweird.f32 %v43
  %vm51 = vmor %vm49, %vm50
  %v52 = vsel %vm51, %v43, %v48
  %v53 = vrsqrt.pop %v42
  %v54 = vmul.f32 %v53, %v42
  %v55 = vmul.f32 %v54, %v53
  %v56 = vmul.f32 0.5, %v55
  %v57 = vsub.f32 1.5, %v56
  %v58 = vmul.f32 %v53, %v57
  %vm59 = vweird.f32 %v42
  %vm60 = vweird.f32 %v53
  %vm61 = vmor %vm59, %vm60
  %v62 = vsel %vm61, %v53, %v58
  %v63 = vmul.f32 %v31, %v52
  %v64 = vmul.f32 %v32, %v62
  %v66 = vperm.slane %v16, 0
  %v68 = vmul.f32 %v63, %v66
  %v69 = vmul.f32 %v64, %v66
  %v71 = vperm.slane %v17, 0
  %v73 = vadd.f32 %v68, %v71
  %v74 = vadd.f32 %v69, %v71
  %75 = vst [vmem:[%s3] sm:$0xff] %v73
  %76 = vst [vmem:[%s3 + $0x8] sm:$0xff] %v74
  // Predicated region
  $region14: #{bert_model_forward.5} parent=0 // pred_check
    _
  $region15: #{bert_model_forward.5} parent=0 // pred_check_branch
    %78 = sbr.rel (0) target = $region17
  $region16: #{bert_model_forward.5} parent=0 // pred_region
    _
  $region17: #{bert_model_forward.5} parent=0 // pred_fallthru
    _
  // Predicated region
  $region18: #{bert_model_forward.5} parent=0 // pred_check
    _
  $region19: #{bert_model_forward.5} parent=0 // pred_check_branch
    %80 = sbr.rel (0) target = $region21
  $region20: #{bert_model_forward.5} parent=0 // pred_region
    _
  $region21: #{bert_model_forward.5} parent=0 // pred_fallthru
    _

// kernel: bert_model_forward.7
$region0: #{bert_model_forward.7}
  #allocation0 [shape = 'u32[]', space=smem, size = 0x4, offset = 0x4, fixed_abs, tag = 'smem constant byte address 0x4 - core index']
  #allocation1 [shape = 'u32[72,128]{1,0:T(1,128)}', space=vmem, size = 0x9000, scoped, tag = 'internal scratch']
  %s0 = inlined_call_operand.vmem [shape: f32[16,128], index: 0, kind: input, shape index: {}]
  %s1 = inlined_call_operand.hbm [shape: bf16[128,256], index: 1, kind: input, shape index: {}]
  %s2 = inlined_call_operand.vmem [shape: f32[1,256], index: 2, kind: input, shape index: {}]
  %s3 = inlined_call_operand.hbm [shape: bf16[256,128], index: 3, kind: input, shape index: {}]
  %s4 = inlined_call_operand.vmem [shape: f32[1,128], index: 4, kind: input, shape index: {}]
  %s5 = inlined_call_operand.vmem [shape: f32[1,128], index: 5, kind: input, shape index: {}]
  %s6 = inlined_call_operand.vmem [shape: f32[1,128], index: 6, kind: input, shape index: {}]
  %s7 = inlined_call_operand.vmem [shape: f32[16,128], index: 7, kind: output, shape index: {}]
  %s8 = sld [smem:[#allocation0]]
  $region46: #{bert_model_forward.7} parent=0
    _
  %s10 = ssub.s32 1, %s8
  %s11 = scalar_select 0, %s10, %s8
  $region1: #{bert_model_forward.7} parent=0
    #allocation2 [shape = 'u8[65536]{0}', space=vmem, size = 0x10000, scoped, tag = 'input window, operand 1, single buffered']
    #allocation3 [shape = 's32[1]{0}', space=sflag, size = 0x4, scoped, tag = 'scoped memory for bert_model_forward.7']
    #allocation4 [shape = 'u8[65536]{0}', space=vmem, size = 0x10000, scoped, tag = 'input window, operand 3, single buffered']
    #allocation5 [shape = 's32[1]{0}', space=sflag, size = 0x4, scoped, tag = 'scoped memory for bert_model_forward.7']
    %12 = vsyncpa [#allocation3], 0
    %13 = vsyncpa [#allocation5], 0
    // Predicated region
    $region2: #{bert_model_forward.7} parent=1 // pred_check
      _
    $region3: #{bert_model_forward.7} parent=1 // pred_check_branch
      %15 = sbr.rel (0) target = $region5
    $region4: #{bert_model_forward.7} parent=1 // pred_region
      _
    $region5: #{bert_model_forward.7} parent=1 // pred_fallthru
      _
    // Predicated region
    $region6: #{bert_model_forward.7} parent=1 // pred_check
      _
    $region7: #{bert_model_forward.7} parent=1 // pred_check_branch
      %17 = sbr.rel (0) target = $region9
    $region8: #{bert_model_forward.7} parent=1 // pred_region
      %19 = vsyncadd [#allocation3], 0
      %s20 = sshll.u32 %s1, 4
      %s21 = int_to_ptr.hbm [resolvable:$true] %s20
      %s22 = sshll.u32 [#allocation2], 4
      %s23 = int_to_ptr.vmem [resolvable:$true] %s22
      %28 = dma.hbm_to_vmem [thread:$0]  %s21, 2048, %s23, [#allocation3], 128, 128, 8
    $region9: #{bert_model_forward.7} parent=1 // pred_fallthru
      _
    // Predicated region
    $region10: #{bert_model_forward.7} parent=1 // pred_check
      _
    $region11: #{bert_model_forward.7} parent=1 // pred_check_branch
      %30 = sbr.rel (0) target = $region13
    $region12: #{bert_model_forward.7} parent=1 // pred_region
      _
    $region13: #{bert_model_forward.7} parent=1 // pred_fallthru
      _
    // Predicated region
    $region14: #{bert_model_forward.7} parent=1 // pred_check
      _
    $region15: #{bert_model_forward.7} parent=1 // pred_check_branch
      %32 = sbr.rel (0) target = $region17
    $region16: #{bert_model_forward.7} parent=1 // pred_region
      %34 = vsyncadd [#allocation5], 0
      %s35 = sshll.u32 %s3, 4
      %s36 = int_to_ptr.hbm [resolvable:$true] %s35
      %s37 = sshll.u32 [#allocation4], 4
      %s38 = int_to_ptr.vmem [resolvable:$true] %s37
      %43 = dma.hbm_to_vmem [thread:$0]  %s36, 2048, %s38, [#allocation5], 64, 64, 4
    $region17: #{bert_model_forward.7} parent=1 // pred_fallthru
      _
    // Predicated region
    $region18: #{bert_model_forward.7} parent=1 // pred_check
      _
    $region19: #{bert_model_forward.7} parent=1 // pred_check_branch
      %45 = sbr.rel (0) target = $region21
    $region20: #{bert_model_forward.7} parent=1 // pred_region
      _
    $region21: #{bert_model_forward.7} parent=1 // pred_fallthru
      _
    // Predicated region
    $region22: #{bert_model_forward.7} parent=1 // pred_check
      _
    $region23: #{bert_model_forward.7} parent=1 // pred_check_branch
      %47 = sbr.rel (0) target = $region25
    $region24: #{bert_model_forward.7} parent=1 // pred_region
      _
    $region25: #{bert_model_forward.7} parent=1 // pred_fallthru
      _
    // Predicated region
    $region26: #{bert_model_forward.7} parent=1 // pred_check
      _
    $region27: #{bert_model_forward.7} parent=1 // pred_check_branch
      %49 = sbr.rel (0) target = $region29
    $region28: #{bert_model_forward.7} parent=1 // pred_region
      _
    $region29: #{bert_model_forward.7} parent=1 // pred_fallthru
      _
    // Predicated region
    $region30: #{bert_model_forward.7} parent=1 // pred_check
      _
    $region31: #{bert_model_forward.7} parent=1 // pred_check_branch
      %51 = sbr.rel (0) target = $region33
    $region32: #{bert_model_forward.7} parent=1 // pred_region
      %53 = dma.done [#allocation3], 2048
    $region33: #{bert_model_forward.7} parent=1 // pred_fallthru
      _
    // Predicated region
    $region34: #{bert_model_forward.7} parent=1 // pred_check
      _
    $region35: #{bert_model_forward.7} parent=1 // pred_check_branch
      %55 = sbr.rel (0) target = $region37
    $region36: #{bert_model_forward.7} parent=1 // pred_region
      %57 = dma.done [#allocation5], 2048
    $region37: #{bert_model_forward.7} parent=1 // pred_fallthru
      _
    %v58 = vld [vmem:[%s0] sm:$0xff]
    %v59 = vld [vmem:[%s0 + $0x8] sm:$0xff]
    %v60 = vpack.c.bf16 %v59, %v58
    %v61 = vld [vmem:[#allocation2] sm:$0xff]
    %v62 = vld [vmem:[#allocation2 + $0x8] sm:$0xff]
    %v63 = vld [vmem:[#allocation2 + $0x10] sm:$0xff]
    %v64 = vld [vmem:[#allocation2 + $0x18] sm:$0xff]
    %v65 = vld [vmem:[#allocation2 + $0x20] sm:$0xff]
    %v66 = vld [vmem:[#allocation2 + $0x28] sm:$0xff]
    %v67 = vld [vmem:[#allocation2 + $0x30] sm:$0xff]
    %v68 = vld [vmem:[#allocation2 + $0x38] sm:$0xff]
    %v69 = vld [vmem:[#allocation2 + $0x40] sm:$0xff]
    %v70 = vld [vmem:[#allocation2 + $0x48] sm:$0xff]
    %v71 = vld [vmem:[#allocation2 + $0x50] sm:$0xff]
    %v72 = vld [vmem:[#allocation2 + $0x58] sm:$0xff]
    %v73 = vld [vmem:[#allocation2 + $0x60] sm:$0xff]
    %v74 = vld [vmem:[#allocation2 + $0x68] sm:$0xff]
    %v75 = vld [vmem:[#allocation2 + $0x70] sm:$0xff]
    %v76 = vld [vmem:[#allocation2 + $0x78] sm:$0xff]
    %v77 = vld [vmem:[%s2] sm:$0x3]
    %v79 = vperm.slane %v77, 0
    %v80 = vperm.slane %v77, 1
    %v99 = vunpack.c.l.b16 %v61
    %v100 = vunpack.c.h.b16 %v61
    %v101 = vunpack.c.l.b16 %v62
    %v102 = vunpack.c.h.b16 %v62
    %v103 = vunpack.c.l.b16 %v63
    %v104 = vunpack.c.h.b16 %v63
    %v105 = vunpack.c.l.b16 %v64
    %v106 = vunpack.c.h.b16 %v64
    %v107 = vunpack.c.l.b16 %v65
    %v108 = vunpack.c.h.b16 %v65
    %v109 = vunpack.c.l.b16 %v66
    %v110 = vunpack.c.h.b16 %v66
    %v111 = vunpack.c.l.b16 %v67
    %v112 = vunpack.c.h.b16 %v67
    %v113 = vunpack.c.l.b16 %v68
    %v114 = vunpack.c.h.b16 %v68
    %v115 = vunpack.c.l.b16 %v69
    %v116 = vunpack.c.h.b16 %v69
    %v117 = vunpack.c.l.b16 %v70
    %v118 = vunpack.c.h.b16 %v70
    %v119 = vunpack.c.l.b16 %v71
    %v120 = vunpack.c.h.b16 %v71
    %v121 = vunpack.c.l.b16 %v72
    %v122 = vunpack.c.h.b16 %v72
    %v123 = vunpack.c.l.b16 %v73
    %v124 = vunpack.c.h.b16 %v73
    %v125 = vunpack.c.l.b16 %v74
    %v126 = vunpack.c.h.b16 %v74
    %v127 = vunpack.c.l.b16 %v75
    %v128 = vunpack.c.h.b16 %v75
    %v129 = vunpack.c.l.b16 %v76
    %v130 = vunpack.c.h.b16 %v76
    %v131 = vpack.c.b16 %v101, %v99
    %v132 = vpack.c.b16 %v102, %v100
    %v133 = vpack.c.b16 %v105, %v103
    %v134 = vpack.c.b16 %v106, %v104
    %v135 = vpack.c.b16 %v109, %v107
    %v136 = vpack.c.b16 %v110, %v108
    %v137 = vpack.c.b16 %v113, %v111
    %v138 = vpack.c.b16 %v114, %v112
    %v139 = vpack.c.b16 %v117, %v115
    %v140 = vpack.c.b16 %v118, %v116
    %v141 = vpack.c.b16 %v121, %v119
    %v142 = vpack.c.b16 %v122, %v120
    %v143 = vpack.c.b16 %v125, %v123
    %v144 = vpack.c.b16 %v126, %v124
    %v145 = vpack.c.b16 %v129, %v127
    %v146 = vpack.c.b16 %v130, %v128
    %163 = vmatpush.bf16.msra.mxu0 %v145
    %164 = vmatpush.bf16.msra.mxu0 %v143
    %165 = vmatpush.bf16.msra.mxu0 %v141
    %166 = vmatpush.bf16.msra.mxu0 %v139
    %167 = vmatpush.bf16.msra.mxu0 %v137
    %168 = vmatpush.bf16.msra.mxu0 %v135
    %169 = vmatpush.bf16.msra.mxu0 %v133
    %170 = vmatpush.bf16.msra.mxu0 %v131
    %171 = vmatmul.bf16.gmra.mxu0 %v60
    %v172 = vpop.f32.mrf.mxu0
    %v173 = vadd.f32 %v79, %v172
    %v174 = vpop.f32.mrf.mxu0
    %v175 = vadd.f32 %v79, %v174
    %176 = vdwg.mxu0
    %177 = vmatpush.bf16.msra.mxu0 %v146
    %178 = vmatpush.bf16.msra.mxu0 %v144
    %179 = vmatpush.bf16.msra.mxu0 %v142
    %180 = vmatpush.bf16.msra.mxu0 %v140
    %181 = vmatpush.bf16.msra.mxu0 %v138
    %182 = vmatpush.bf16.msra.mxu0 %v136
    %183 = vmatpush.bf16.msra.mxu0 %v134
    %184 = vmatpush.bf16.msra.mxu0 %v132
    %185 = vmatmul.bf16.gmra.mxu0 %v60
    %v186 = vpop.f32.mrf.mxu0
    %v187 = vadd.f32 %v80, %v186
    %v188 = vpop.f32.mrf.mxu0
    %v189 = vadd.f32 %v80, %v188
    %190 = vdwg.mxu0
    %v191 = vmul.f32 %v173, 0.5
    %v192 = vmul.f32 %v187, 0.5
    %v193 = vmul.f32 %v175, 0.5
    %v194 = vmul.f32 %v189, 0.5
    %v195 = vmul.f32 %v173, 0.044715
    %v196 = vmul.f32 %v187, 0.044715
    %v197 = vmul.f32 %v175, 0.044715
    %v198 = vmul.f32 %v189, 0.044715
    %v199 = vmul.f32 %v195, %v173
    %v200 = vmul.f32 %v196, %v187
    %v201 = vmul.f32 %v197, %v175
    %v202 = vmul.f32 %v198, %v189
    %v203 = vmul.f32 %v199, %v173
    %v204 = vmul.f32 %v200, %v187
    %v205 = vmul.f32 %v201, %v175
    %v206 = vmul.f32 %v202, %v189
    %v207 = vadd.f32 %v173, %v203
    %v208 = vadd.f32 %v187, %v204
    %v209 = vadd.f32 %v175, %v205
    %v210 = vadd.f32 %v189, %v206
    %v211 = vmul.f32 %v207, 0.7978846
    %v212 = vmul.f32 %v208, 0.7978846
    %v213 = vmul.f32 %v209, 0.7978846
    %v214 = vmul.f32 %v210, 0.7978846
    %v215 = vtanh.pop %v211
    %v216 = vtanh.pop %v212
    %v217 = vtanh.pop %v213
    %v218 = vtanh.pop %v214
    %v219 = vadd.f32 %v215, 1.0
    %v220 = vadd.f32 %v216, 1.0
    %v221 = vadd.f32 %v217, 1.0
    %v222 = vadd.f32 %v218, 1.0
    %v223 = vmul.f32 %v191, %v219
    %v224 = vmul.f32 %v192, %v220
    %v225 = vmul.f32 %v193, %v221
    %v226 = vmul.f32 %v194, %v222
    %v227 = vpack.c.bf16 %v225, %v223
    %v228 = vpack.c.bf16 %v226, %v224
    %v229 = vld [vmem:[#allocation4] sm:$0xf]
    %v230 = vld [vmem:[#allocation4 + $0x4] sm:$0xf]
    %v231 = vld [vmem:[#allocation4 + $0x8] sm:$0xf]
    %v232 = vld [vmem:[#allocation4 + $0xc] sm:$0xf]
    %v233 = vld [vmem:[#allocation4 + $0x10] sm:$0xf]
    %v234 = vld [vmem:[#allocation4 + $0x14] sm:$0xf]
    %v235 = vld [vmem:[#allocation4 + $0x18] sm:$0xf]
    %v236 = vld [vmem:[#allocation4 + $0x1c] sm:$0xf]
    %v237 = vld [vmem:[#allocation4 + $0x20] sm:$0xf]
    %v238 = vld [vmem:[#allocation4 + $0x24] sm:$0xf]
    %v239 = vld [vmem:[#allocation4 + $0x28] sm:$0xf]
    %v240 = vld [vmem:[#allocation4 + $0x2c] sm:$0xf]
    %v241 = vld [vmem:[#allocation4 + $0x30] sm:$0xf]
    %v242 = vld [vmem:[#allocation4 + $0x34] sm:$0xf]
    %v243 = vld [vmem:[#allocation4 + $0x38] sm:$0xf]
    %v244 = vld [vmem:[#allocation4 + $0x3c] sm:$0xf]
    %v245 = vld [vmem:[#allocation4 + $0x40] sm:$0xf]
    %v246 = vld [vmem:[#allocation4 + $0x44] sm:$0xf]
    %v247 = vld [vmem:[#allocation4 + $0x48] sm:$0xf]
    %v248 = vld [vmem:[#allocation4 + $0x4c] sm:$0xf]
    %v249 = vld [vmem:[#allocation4 + $0x50] sm:$0xf]
    %v250 = vld [vmem:[#allocation4 + $0x54] sm:$0xf]
    %v251 = vld [vmem:[#allocation4 + $0x58] sm:$0xf]
    %v252 = vld [vmem:[#allocation4 + $0x5c] sm:$0xf]
    %v253 = vld [vmem:[#allocation4 + $0x60] sm:$0xf]
    %v254 = vld [vmem:[#allocation4 + $0x64] sm:$0xf]
    %v255 = vld [vmem:[#allocation4 + $0x68] sm:$0xf]
    %v256 = vld [vmem:[#allocation4 + $0x6c] sm:$0xf]
    %v257 = vld [vmem:[#allocation4 + $0x70] sm:$0xf]
    %v258 = vld [vmem:[#allocation4 + $0x74] sm:$0xf]
    %v259 = vld [vmem:[#allocation4 + $0x78] sm:$0xf]
    %v260 = vld [vmem:[#allocation4 + $0x7c] sm:$0xf]
    %v261 = vld [vmem:[%s4] sm:$0x1]
    %v263 = vperm.slane %v261, 0
    %v297 = vunpack.c.l.b16 %v229
    %v298 = vunpack.c.l.b16 %v230
    %v299 = vunpack.c.l.b16 %v231
    %v300 = vunpack.c.l.b16 %v232
    %v301 = vunpack.c.l.b16 %v233
    %v302 = vunpack.c.l.b16 %v234
    %v303 = vunpack.c.l.b16 %v235
    %v304 = vunpack.c.l.b16 %v236
    %v305 = vunpack.c.l.b16 %v237
    %v306 = vunpack.c.l.b16 %v238
    %v307 = vunpack.c.l.b16 %v239
    %v308 = vunpack.c.l.b16 %v240
    %v309 = vunpack.c.l.b16 %v241
    %v310 = vunpack.c.l.b16 %v242
    %v311 = vunpack.c.l.b16 %v243
    %v312 = vunpack.c.l.b16 %v244
    %v313 = vunpack.c.l.b16 %v245
    %v314 = vunpack.c.l.b16 %v246
    %v315 = vunpack.c.l.b16 %v247
    %v316 = vunpack.c.l.b16 %v248
    %v317 = vunpack.c.l.b16 %v249
    %v318 = vunpack.c.l.b16 %v250
    %v319 = vunpack.c.l.b16 %v251
    %v320 = vunpack.c.l.b16 %v252
    %v321 = vunpack.c.l.b16 %v253
    %v322 = vunpack.c.l.b16 %v254
    %v323 = vunpack.c.l.b16 %v255
    %v324 = vunpack.c.l.b16 %v256
    %v325 = vunpack.c.l.b16 %v257
    %v326 = vunpack.c.l.b16 %v258
    %v327 = vunpack.c.l.b16 %v259
    %v328 = vunpack.c.l.b16 %v260
    %v329 = vpack.c.b16 %v298, %v297
    %v330 = vpack.c.b16 %v300, %v299
    %v331 = vpack.c.b16 %v302, %v301
    %v332 = vpack.c.b16 %v304, %v303
    %v333 = vpack.c.b16 %v306, %v305
    %v334 = vpack.c.b16 %v308, %v307
    %v335 = vpack.c.b16 %v310, %v309
    %v336 = vpack.c.b16 %v312, %v311
    %v337 = vpack.c.b16 %v314, %v313
    %v338 = vpack.c.b16 %v316, %v315
    %v339 = vpack.c.b16 %v318, %v317
    %v340 = vpack.c.b16 %v320, %v319
    %v341 = vpack.c.b16 %v322, %v321
    %v342 = vpack.c.b16 %v324, %v323
    %v343 = vpack.c.b16 %v326, %v325
    %v344 = vpack.c.b16 %v328, %v327
    %361 = vmatpush.bf16.msra.mxu0 %v336
    %362 = vmatpush.bf16.msra.mxu0 %v335
    %363 = vmatpush.bf16.msra.mxu0 %v334
    %364 = vmatpush.bf16.msra.mxu0 %v333
    %365 = vmatpush.bf16.msra.mxu0 %v332
    %366 = vmatpush.bf16.msra.mxu0 %v331
    %367 = vmatpush.bf16.msra.mxu0 %v330
    %368 = vmatpush.bf16.msra.mxu0 %v329
    %369 = vmatmul.bf16.gmra.mxu0 %v227
    %v370 = vpop.f32.mrf.mxu0
    %v371 = vadd.f32 %v263, %v370
    %v372 = vpop.f32.mrf.mxu0
    %v373 = vadd.f32 %v263, %v372
    %374 = vdwg.mxu0
    %375 = vmatpush.bf16.msra.mxu0 %v344
    %376 = vmatpush.bf16.msra.mxu0 %v343
    %377 = vmatpush.bf16.msra.mxu0 %v342
    %378 = vmatpush.bf16.msra.mxu0 %v341
    %379 = vmatpush.bf16.msra.mxu0 %v340
    %380 = vmatpush.bf16.msra.mxu0 %v339
    %381 = vmatpush.bf16.msra.mxu0 %v338
    %382 = vmatpush.bf16.msra.mxu0 %v337
    %383 = vmatmul.bf16.gmra.mxu0 %v228
    %v384 = vpop.f32.mrf.mxu0
    %v385 = vadd.f32 %v371, %v384
    %v386 = vpop.f32.mrf.mxu0
    %v387 = vadd.f32 %v373, %v386
    %388 = vdwg.mxu0
    %v389 = vadd.f32 %v385, %v58
    %v390 = vadd.f32 %v387, %v59
    %v391 = vld [vmem:[%s5] sm:$0x1]
    %v392 = vld [vmem:[%s6] sm:$0x1]
    %393 = vadd.xlane.f32.xlu0 %v389
    %v394 = vpop.xlane.xlu0 %393
    %395 = vadd.xlane.f32.xlu0 %v390
    %v396 = vpop.xlane.xlu0 %395
    %v397 = vrcp.pop 128.0
    %v398 = vmul.f32 128.0, %v397
    %v399 = vsub.f32 1.0, %v398
    %v400 = vmul.f32 %v397, %v399
    %v401 = vadd.f32 %v397, %v400
    %vm402 = vweird.f32 %v397
    %v403 = vsel %vm402, %v397, %v401
    %v404 = vmul.f32 %v394, %v403
    %v405 = vmul.f32 %v396, %v403
    %v406 = vsub.f32 %v389, %v404
    %v407 = vsub.f32 %v390, %v405
    %v408 = vmul.f32 %v406, %v406
    %v409 = vmul.f32 %v407, %v407
    %410 = vadd.xlane.f32.xlu0 %v408
    %v411 = vpop.xlane.xlu0 %410
    %412 = vadd.xlane.f32.xlu0 %v409
    %v413 = vpop.xlane.xlu0 %412
    %v414 = vmul.f32 %v411, %v403
    %v415 = vmul.f32 %v413, %v403
    %v416 = vadd.f32 %v414, 1e-12
    %v417 = vadd.f32 %v415, 1e-12
    %v418 = vrsqrt.pop %v416
    %v419 = vmul.f32 %v418, %v416
    %v420 = vmul.f32 %v419, %v418
    %v421 = vmul.f32 0.5, %v420
    %v422 = vsub.f32 1.5, %v421
    %v423 = vmul.f32 %v418, %v422
    %vm424 = vweird.f32 %v416
    %vm425 = vweird.f32 %v418
    %vm426 = vmor %vm424, %vm425
    %v427 = vsel %vm426, %v418, %v423
    %v428 = vrsqrt.pop %v417
    %v429 = vmul.f32 %v428, %v417
    %v430 = vmul.f32 %v429, %v428
    %v431 = vmul.f32 0.5, %v430
    %v432 = vsub.f32 1.5, %v431
    %v433 = vmul.f32 %v428, %v432
    %vm434 = vweird.f32 %v417
    %vm435 = vweird.f32 %v428
    %vm436 = vmor %vm434, %vm435
    %v437 = vsel %vm436, %v428, %v433
    %v438 = vmul.f32 %v406, %v427
    %v439 = vmul.f32 %v407, %v437
    %v441 = vperm.slane %v391, 0
    %v443 = vmul.f32 %v438, %v441
    %v444 = vmul.f32 %v439, %v441
    %v446 = vperm.slane %v392, 0
    %v448 = vadd.f32 %v443, %v446
    %v449 = vadd.f32 %v444, %v446
    %450 = vst [vmem:[%s7] sm:$0xff] %v448
    %451 = vst [vmem:[%s7 + $0x8] sm:$0xff] %v449
    // Predicated region
    $region38: #{bert_model_forward.7} parent=1 // pred_check
      _
    $region39: #{bert_model_forward.7} parent=1 // pred_check_branch
      %453 = sbr.rel (0) target = $region41
    $region40: #{bert_model_forward.7} parent=1 // pred_region
      _
    $region41: #{bert_model_forward.7} parent=1 // pred_fallthru
      _
    // Predicated region
    $region42: #{bert_model_forward.7} parent=1 // pred_check
      _
    $region43: #{bert_model_forward.7} parent=1 // pred_check_branch
      %455 = sbr.rel (0) target = $region45
    $region44: #{bert_model_forward.7} parent=1 // pred_region
      _
    $region45: #{bert_model_forward.7} parent=1 // pred_fallthru
      _
    %456 = vsyncpa [#allocation3], 1
    %457 = vsyncpa [#allocation5], 1

// kernel: bert_model_forward.6
$region0: #{bert_model_forward.6}
  #allocation0 [shape = 'u32[]', space=smem, size = 0x4, offset = 0x4, fixed_abs, tag = 'smem constant byte address 0x4 - core index']
  #allocation1 [shape = 'u32[72,128]{1,0:T(1,128)}', space=vmem, size = 0x9000, scoped, tag = 'internal scratch']
  %s0 = inlined_call_operand.vmem [shape: f32[16,128], index: 0, kind: input, shape index: {}]
  %s1 = inlined_call_operand.hbm [shape: bf16[128,384], index: 1, kind: input, shape index: {}]
  %s2 = inlined_call_operand.vmem [shape: f32[1,384], index: 2, kind: input, shape index: {}]
  %s3 = inlined_call_operand.hbm [shape: bf16[128,128], index: 3, kind: input, shape index: {}]
  %s4 = inlined_call_operand.vmem [shape: f32[1,128], index: 4, kind: input, shape index: {}]
  %s5 = inlined_call_operand.vmem [shape: f32[1,128], index: 5, kind: input, shape index: {}]
  %s6 = inlined_call_operand.vmem [shape: f32[1,128], index: 6, kind: input, shape index: {}]
  %s7 = inlined_call_operand.vmem [shape: f32[2,1,8], index: 7, kind: input, shape index: {}]
  %s8 = inlined_call_operand.vmem [shape: f32[16,128], index: 8, kind: output, shape index: {}]
  %s9 = sld [smem:[#allocation0]]
  $region73: #{bert_model_forward.6} parent=0
    _
  %s11 = ssub.s32 1, %s9
  %s12 = scalar_select 0, %s11, %s9
  $region1: #{bert_model_forward.6} parent=0
    #allocation2 [shape = 'u8[98304]{0}', space=vmem, size = 0x18000, scoped, tag = 'input window, operand 1, single buffered']
    #allocation3 [shape = 's32[2]{0}', space=sflag, size = 0x8, scoped, tag = 'scoped memory for bert_model_forward.6']
    #allocation4 [shape = 'u8[32768]{0}', space=vmem, size = 0x8000, scoped, tag = 'input window, operand 3, single buffered']
    #allocation5 [shape = 's32[1]{0}', space=sflag, size = 0x4, scoped, tag = 'scoped memory for bert_model_forward.6']
    %13 = vsyncpa [#allocation3], 0
    %14 = vsyncpa [#allocation5], 0
    loop: start=0, step=1, limit=4
    $region2: #{bert_model_forward.6} parent=1 // loop_pre_header
      _
    $region3: #{bert_model_forward.6} parent=1 // loop_header
      %s16 = sphi 0, %s20
      %p17 = scmp.ge.s32.totalorder %s16, 4
      %s26 = sphi 0, %s28
      %s29 = sphi 0, %s26
      %s30 = sphi 0, %s29
      %s46 = sphi 0, %s30
      %s50 = sphi 0, %s50
      %s52 = sphi 0, %s50
      %s53 = sphi 0, %s52
      %s67 = sphi 0, %s53
      %s71 = sphi 0, %s71
      %s73 = sphi 0, %s71
      %s74 = sphi 0, %s73
      %s88 = sphi 0, %s74
      %s92 = sphi 0, %s92
      %s94 = sphi 0, %s92
      %s95 = sphi 0, %s94
      %s109 = sphi 0, %s95
      %s113 = sphi 0, %s113
      %s115 = sphi 0, %s113
      %s116 = sphi 0, %s115
      %s130 = sphi 0, %s116
      %s134 = sphi 0, %s134
      %s136 = sphi 0, %s134
      %s137 = sphi 0, %s136
      %s151 = sphi 0, %s137
      %s155 = sphi 0, %s155
      %s157 = sphi 0, %s155
      %s158 = sphi 0, %s157
      %s172 = sphi 0, %s158
      %s178 = sphi 0, %s180
      %s181 = sphi 0, %s178
      %s182 = sphi 0, %s181
      %s198 = sphi 0, %s182
      %s204 = sphi 0, %s206
      %s207 = sphi 0, %s204
      %s208 = sphi 0, %s207
      %s224 = sphi 0, %s208
    $region4: #{bert_model_forward.6} parent=1 // loop_header_branch
      %19 = sbr.rel (%p17) target = $region8
    $region5: #{bert_model_forward.6} parent=1 // loop_body
      %s21 = ssub.s32 %s16, 1
      %s22 = ssub.s32 %s16, 2
      %s23 = sadd.s32 %s16, 1
      %s24 = ssub.s32 %s16, %s23
      %p25 = scmp.eq.s32.totalorder %s24, 0
      %s27 = sadd.s32 %s26, 1
      %s28 = scalar_select %p25, %s26, %s27
      %p31 = pneg %p25
      %p32 = scmp.eq.s32.totalorder %s16, 1
      %p33 = por %p31, %p32
      %p34 = scmp.ne.s32.totalorder %s26, %s29
      %p35 = scmp.eq.s32.totalorder %s16, 0
      %p36 = por %p34, %p35
      %p37 = scmp.ne.s32.totalorder %s26, %s29
      %p38 = scmp.eq.s32.totalorder %s21, 1
      %p39 = por %p37, %p38
      %p40 = scmp.ne.s32.totalorder %s29, %s30
      %p41 = scmp.eq.s32.totalorder %s21, 0
      %p42 = por %p40, %p41
      %p43 = scmp.ne.s32.totalorder %s29, %s30
      %p44 = scmp.eq.s32.totalorder %s22, 1
      %p45 = por %p43, %p44
      %p47 = scmp.ne.s32.totalorder %s30, %s46
      %p48 = scmp.eq.s32.totalorder %s22, 0
      %p49 = por %p47, %p48
      %s51 = sadd.s32 %s50, 1
      %p54 = scmp.eq.s32.totalorder %s16, 1
      %p55 = scmp.ne.s32.totalorder %s50, %s52
      %p56 = scmp.eq.s32.totalorder %s16, 0
      %p57 = por %p55, %p56
      %p58 = scmp.ne.s32.totalorder %s50, %s52
      %p59 = scmp.eq.s32.totalorder %s21, 1
      %p60 = por %p58, %p59
      %p61 = scmp.ne.s32.totalorder %s52, %s53
      %p62 = scmp.eq.s32.totalorder %s21, 0
      %p63 = por %p61, %p62
      %p64 = scmp.ne.s32.totalorder %s52, %s53
      %p65 = scmp.eq.s32.totalorder %s22, 1
      %p66 = por %p64, %p65
      %p68 = scmp.ne.s32.totalorder %s53, %s67
      %p69 = scmp.eq.s32.totalorder %s22, 0
      %p70 = por %p68, %p69
      %s72 = sadd.s32 %s71, 1
      %p75 = scmp.eq.s32.totalorder %s16, 1
      %p76 = scmp.ne.s32.totalorder %s71, %s73
      %p77 = scmp.eq.s32.totalorder %s16, 0
      %p78 = por %p76, %p77
      %p79 = scmp.ne.s32.totalorder %s71, %s73
      %p80 = scmp.eq.s32.totalorder %s21, 1
      %p81 = por %p79, %p80
      %p82 = scmp.ne.s32.totalorder %s73, %s74
      %p83 = scmp.eq.s32.totalorder %s21, 0
      %p84 = por %p82, %p83
      %p85 = scmp.ne.s32.totalorder %s73, %s74
      %p86 = scmp.eq.s32.totalorder %s22, 1
      %p87 = por %p85, %p86
      %p89 = scmp.ne.s32.totalorder %s74, %s88
      %p90 = scmp.eq.s32.totalorder %s22, 0
      %p91 = por %p89, %p90
      %s93 = sadd.s32 %s92, 1
      %p96 = scmp.eq.s32.totalorder %s16, 1
      %p97 = scmp.ne.s32.totalorder %s92, %s94
      %p98 = scmp.eq.s32.totalorder %s16, 0
      %p99 = por %p97, %p98
      %p100 = scmp.ne.s32.totalorder %s92, %s94
      %p101 = scmp.eq.s32.totalorder %s21, 1
      %p102 = por %p100, %p101
      %p103 = scmp.ne.s32.totalorder %s94, %s95
      %p104 = scmp.eq.s32.totalorder %s21, 0
      %p105 = por %p103, %p104
      %p106 = scmp.ne.s32.totalorder %s94, %s95
      %p107 = scmp.eq.s32.totalorder %s22, 1
      %p108 = por %p106, %p107
      %p110 = scmp.ne.s32.totalorder %s95, %s109
      %p111 = scmp.eq.s32.totalorder %s22, 0
      %p112 = por %p110, %p111
      %s114 = sadd.s32 %s113, 1
      %p117 = scmp.eq.s32.totalorder %s16, 1
      %p118 = scmp.ne.s32.totalorder %s113, %s115
      %p119 = scmp.eq.s32.totalorder %s16, 0
      %p120 = por %p118, %p119
      %p121 = scmp.ne.s32.totalorder %s113, %s115
      %p122 = scmp.eq.s32.totalorder %s21, 1
      %p123 = por %p121, %p122
      %p124 = scmp.ne.s32.totalorder %s115, %s116
      %p125 = scmp.eq.s32.totalorder %s21, 0
      %p126 = por %p124, %p125
      %p127 = scmp.ne.s32.totalorder %s115, %s116
      %p128 = scmp.eq.s32.totalorder %s22, 1
      %p129 = por %p127, %p128
      %p131 = scmp.ne.s32.totalorder %s116, %s130
      %p132 = scmp.eq.s32.totalorder %s22, 0
      %p133 = por %p131, %p132
      %s135 = sadd.s32 %s134, 1
      %p138 = scmp.eq.s32.totalorder %s16, 1
      %p139 = scmp.ne.s32.totalorder %s134, %s136
      %p140 = scmp.eq.s32.totalorder %s16, 0
      %p141 = por %p139, %p140
      %p142 = scmp.ne.s32.totalorder %s134, %s136
      %p143 = scmp.eq.s32.totalorder %s21, 1
      %p144 = por %p142, %p143
      %p145 = scmp.ne.s32.totalorder %s136, %s137
      %p146 = scmp.eq.s32.totalorder %s21, 0
      %p147 = por %p145, %p146
      %p148 = scmp.ne.s32.totalorder %s136, %s137
      %p149 = scmp.eq.s32.totalorder %s22, 1
      %p150 = por %p148, %p149
      %p152 = scmp.ne.s32.totalorder %s137, %s151
      %p153 = scmp.eq.s32.totalorder %s22, 0
      %p154 = por %p152, %p153
      %s156 = sadd.s32 %s155, 1
      %p159 = scmp.eq.s32.totalorder %s16, 1
      %p160 = scmp.ne.s32.totalorder %s155, %s157
      %p161 = scmp.eq.s32.totalorder %s16, 0
      %p162 = por %p160, %p161
      %p163 = scmp.ne.s32.totalorder %s155, %s157
      %p164 = scmp.eq.s32.totalorder %s21, 1
      %p165 = por %p163, %p164
      %p166 = scmp.ne.s32.totalorder %s157, %s158
      %p167 = scmp.eq.s32.totalorder %s21, 0
      %p168 = por %p166, %p167
      %p169 = scmp.ne.s32.totalorder %s157, %s158
      %p170 = scmp.eq.s32.totalorder %s22, 1
      %p171 = por %p169, %p170
      %p173 = scmp.ne.s32.totalorder %s158, %s172
      %p174 = scmp.eq.s32.totalorder %s22, 0
      %p175 = por %p173, %p174
      %s176 = ssub.s32 %s16, %s23
      %p177 = scmp.eq.s32.totalorder %s176, 0
      %s179 = sadd.s32 %s178, 1
      %s180 = scalar_select %p177, %s178, %s179
      %p183 = pneg %p177
      %p184 = scmp.eq.s32.totalorder %s16, 1
      %p185 = por %p183, %p184
      %p186 = scmp.ne.s32.totalorder %s178, %s181
      %p187 = scmp.eq.s32.totalorder %s16, 0
      %p188 = por %p186, %p187
      %p189 = scmp.ne.s32.totalorder %s178, %s181
      %p190 = scmp.eq.s32.totalorder %s21, 1
      %p191 = por %p189, %p190
      %p192 = scmp.ne.s32.totalorder %s181, %s182
      %p193 = scmp.eq.s32.totalorder %s21, 0
      %p194 = por %p192, %p193
      %p195 = scmp.ne.s32.totalorder %s181, %s182
      %p196 = scmp.eq.s32.totalorder %s22, 1
      %p197 = por %p195, %p196
      %p199 = scmp.ne.s32.totalorder %s182, %s198
      %p200 = scmp.eq.s32.totalorder %s22, 0
      %p201 = por %p199, %p200
      %s202 = ssub.s32 %s16, %s23
      %p203 = scmp.eq.s32.totalorder %s202, 0
      %s205 = sadd.s32 %s204, 1
      %s206 = scalar_select %p203, %s204, %s205
      %p209 = pneg %p203
      %p210 = scmp.eq.s32.totalorder %s16, 1
      %p211 = por %p209, %p210
      %p212 = scmp.ne.s32.totalorder %s204, %s207
      %p213 = scmp.eq.s32.totalorder %s16, 0
      %p214 = por %p212, %p213
      %p215 = scmp.ne.s32.totalorder %s204, %s207
      %p216 = scmp.eq.s32.totalorder %s21, 1
      %p217 = por %p215, %p216
      %p218 = scmp.ne.s32.totalorder %s207, %s208
      %p219 = scmp.eq.s32.totalorder %s21, 0
      %p220 = por %p218, %p219
      %p221 = scmp.ne.s32.totalorder %s207, %s208
      %p222 = scmp.eq.s32.totalorder %s22, 1
      %p223 = por %p221, %p222
      %p225 = scmp.ne.s32.totalorder %s208, %s224
      %p226 = scmp.eq.s32.totalorder %s22, 0
      %p227 = por %p225, %p226
      %p228 = scmp.le.s32.totalorder 1, %s16
      %p229 = scmp.lt.s32.totalorder %s16, 3
      %p230 = pnand %p228, %p229
      %p231 = pneg %p230
      // Predicated region
      $region9: #{bert_model_forward.6} parent=5 // pred_check
        _
      $region10: #{bert_model_forward.6} parent=5 // pred_check_branch
        %233 = sbr.rel (%p230) target = $region12
      $region11: #{bert_model_forward.6} parent=5 // pred_region
        %s234 = ssub.s32 %s16, 1
        // Predicated region
        $region13: #{bert_model_forward.6} parent=11 // pred_check
          %p235 = pneg %p63
        $region14: #{bert_model_forward.6} parent=11 // pred_check_branch
          %237 = sbr.rel (%p235) target = $region16
        $region15: #{bert_model_forward.6} parent=11 // pred_region
          %239 = vsyncadd [#allocation3], 0
          %s240 = sshll.u32 %s1, 4
          %s241 = int_to_ptr.hbm [resolvable:$true] %s240
          %s242 = sshll.u32 [#allocation2], 4
          %s243 = int_to_ptr.vmem [resolvable:$true] %s242
          %248 = dma.hbm_to_vmem [thread:$0]  %s241, 3072, %s243, [#allocation3], 192, 192, 12
        $region16: #{bert_model_forward.6} parent=11 // pred_fallthru
          _
        // Predicated region
        $region17: #{bert_model_forward.6} parent=11 // pred_check
          %p249 = pneg %p84
        $region18: #{bert_model_forward.6} parent=11 // pred_check_branch
          %251 = sbr.rel (%p249) target = $region20
        $region19: #{bert_model_forward.6} parent=11 // pred_region
          _
        $region20: #{bert_model_forward.6} parent=11 // pred_fallthru
          _
        // Predicated region
        $region21: #{bert_model_forward.6} parent=11 // pred_check
          %p252 = pneg %p105
        $region22: #{bert_model_forward.6} parent=11 // pred_check_branch
          %254 = sbr.rel (%p252) target = $region24
        $region23: #{bert_model_forward.6} parent=11 // pred_region
          %256 = vsyncadd [#allocation5], 0
          %s257 = sshll.u32 %s3, 4
          %s258 = int_to_ptr.hbm [resolvable:$true] %s257
          %s259 = sshll.u32 [#allocation4], 4
          %s260 = int_to_ptr.vmem [resolvable:$true] %s259
          %265 = dma.hbm_to_vmem [thread:$0]  %s258, 1024, %s260, [#allocation5], 64, 64, 4
        $region24: #{bert_model_forward.6} parent=11 // pred_fallthru
          _
        // Predicated region
        $region25: #{bert_model_forward.6} parent=11 // pred_check
          %p266 = pneg %p126
        $region26: #{bert_model_forward.6} parent=11 // pred_check_branch
          %268 = sbr.rel (%p266) target = $region28
        $region27: #{bert_model_forward.6} parent=11 // pred_region
          _
        $region28: #{bert_model_forward.6} parent=11 // pred_fallthru
          _
        // Predicated region
        $region29: #{bert_model_forward.6} parent=11 // pred_check
          %p269 = pneg %p147
        $region30: #{bert_model_forward.6} parent=11 // pred_check_branch
          %271 = sbr.rel (%p269) target = $region32
        $region31: #{bert_model_forward.6} parent=11 // pred_region
          _
        $region32: #{bert_model_forward.6} parent=11 // pred_fallthru
          _
        // Predicated region
        $region33: #{bert_model_forward.6} parent=11 // pred_check
          %p272 = pneg %p168
        $region34: #{bert_model_forward.6} parent=11 // pred_check_branch
          %274 = sbr.rel (%p272) target = $region36
        $region35: #{bert_model_forward.6} parent=11 // pred_region
          _
        $region36: #{bert_model_forward.6} parent=11 // pred_fallthru
          _
      $region12: #{bert_model_forward.6} parent=5 // pred_fallthru
        _
      %p275 = scmp.lt.s32.totalorder %s16, 2
      // Predicated region
      $region37: #{bert_model_forward.6} parent=5 // pred_check
        %p276 = pneg %p275
      $region38: #{bert_model_forward.6} parent=5 // pred_check_branch
        %278 = sbr.rel (%p276) target = $region40
      $region39: #{bert_model_forward.6} parent=5 // pred_region
        // Predicated region
        $region41: #{bert_model_forward.6} parent=39 // pred_check
          %p279 = pneg %p36
        $region42: #{bert_model_forward.6} parent=39 // pred_check_branch
          %281 = sbr.rel (%p279) target = $region44
        $region43: #{bert_model_forward.6} parent=39 // pred_region
          %p282 = scmp.lt.s32.totalorder %s16, 1
          %s283 = scalar_select %p282, %s16, 1
          %s284 = smul.addr %s283, 8
          %s285 = scalar_lea.vmem %s0, %s284
        $region44: #{bert_model_forward.6} parent=39 // pred_fallthru
          _
        // Predicated region
        $region45: #{bert_model_forward.6} parent=39 // pred_check
          %p286 = pneg %p188
        $region46: #{bert_model_forward.6} parent=39 // pred_check_branch
          %288 = sbr.rel (%p286) target = $region48
        $region47: #{bert_model_forward.6} parent=39 // pred_region
          %p289 = scmp.lt.s32.totalorder %s16, 1
          %s290 = scalar_select %p289, %s16, 1
          %s291 = scalar_lea.vmem %s7, %s290
        $region48: #{bert_model_forward.6} parent=39 // pred_fallthru
          _
      $region40: #{bert_model_forward.6} parent=5 // pred_fallthru
        _
      %p292 = scmp.le.s32.totalorder 1, %s16
      %p293 = scmp.lt.s32.totalorder %s16, 3
      %p294 = pnand %p292, %p293
      %p295 = pneg %p294
      // Predicated region
      $region49: #{bert_model_forward.6} parent=5 // pred_check
        _
      $region50: #{bert_model_forward.6} parent=5 // pred_check_branch
        %297 = sbr.rel (%p294) target = $region52
      $region51: #{bert_model_forward.6} parent=5 // pred_region
        %s298 = ssub.s32 %s16, 1
        // Predicated region
        $region53: #{bert_model_forward.6} parent=51 // pred_check
          %p299 = pneg %p63
        $region54: #{bert_model_forward.6} parent=51 // pred_check_branch
          %301 = sbr.rel (%p299) target = $region56
        $region55: #{bert_model_forward.6} parent=51 // pred_region
          %303 = dma.done [#allocation3], 3072
        $region56: #{bert_model_forward.6} parent=51 // pred_fallthru
          _
        // Predicated region
        $region57: #{bert_model_forward.6} parent=51 // pred_check
          %p304 = pneg %p105
        $region58: #{bert_model_forward.6} parent=51 // pred_check_branch
          %306 = sbr.rel (%p304) target = $region60
        $region59: #{bert_model_forward.6} parent=51 // pred_region
          %308 = dma.done [#allocation5], 1024
        $region60: #{bert_model_forward.6} parent=51 // pred_fallthru
          _
        %p309 = scmp.lt.s32.totalorder %s21, 1
        %s310 = scalar_select %p309, %s21, 1
        %s311 = smul.addr %s310, 8
        %s312 = scalar_lea.vmem %s0, %s311
        %p313 = pneg %p42
        %p314 = pneg %p39
        %p315 = pneg %p63
        %p316 = pneg %p60
        %p317 = pneg %p84
        %p318 = pneg %p81
        %p319 = pneg %p105
        %p320 = pneg %p102
        %p321 = pneg %p126
        %p322 = pneg %p123
        %p323 = pneg %p147
        %p324 = pneg %p144
        %p325 = pneg %p168
        %p326 = pneg %p165
        %p327 = scmp.lt.s32.totalorder %s21, 1
        %s328 = scalar_select %p327, %s21, 1
        %s329 = scalar_lea.vmem %s7, %s328
        %p330 = pneg %p194
        %p331 = pneg %p191
        %p332 = pneg %p220
        %p333 = pneg %p217
        %p334 = scmp.lt.s32.totalorder %s21, 1
        %s335 = scalar_select %p334, %s21, 1
        %s336 = smul.addr %s335, 8
        %s337 = scalar_lea.vmem %s8, %s336
        %p338 = scmp.lt.s32.totalorder %s21, 1
        %s339 = scalar_select %p338, %s21, 1
        %s340 = smul.addr %s339, 8
        %s341 = scalar_lea.vmem %s0, %s340
        %p342 = scmp.lt.s32.totalorder %s21, 1
        %s343 = scalar_select %p342, %s21, 1
        %s344 = scalar_lea.vmem %s7, %s343
        %p345 = scmp.lt.s32.totalorder %s21, 1
        %s346 = scalar_select %p345, %s21, 1
        %s347 = smul.addr %s346, 8
        %s348 = scalar_lea.vmem %s8, %s347
        %v350 = vld [vmem:[%s341] sm:$0xff]
        %v351 = vpack.c.bf16 %v350, %v350
        %v352 = vld [vmem:[#allocation2] sm:$0xff]
        %v353 = vld [vmem:[#allocation2 + $0x8] sm:$0xf]
        %v354 = vld [vmem:[#allocation2 + $0xc] sm:$0xff]
        %v355 = vld [vmem:[#allocation2 + $0x14] sm:$0xf]
        %v356 = vld [vmem:[#allocation2 + $0x18] sm:$0xff]
        %v357 = vld [vmem:[#allocation2 + $0x20] sm:$0xf]
        %v358 = vld [vmem:[#allocation2 + $0x24] sm:$0xff]
        %v359 = vld [vmem:[#allocation2 + $0x2c] sm:$0xf]
        %v360 = vld [vmem:[#allocation2 + $0x30] sm:$0xff]
        %v361 = vld [vmem:[#allocation2 + $0x38] sm:$0xf]
        %v362 = vld [vmem:[#allocation2 + $0x3c] sm:$0xff]
        %v363 = vld [vmem:[#allocation2 + $0x44] sm:$0xf]
        %v364 = vld [vmem:[#allocation2 + $0x48] sm:$0xff]
        %v365 = vld [vmem:[#allocation2 + $0x50] sm:$0xf]
        %v366 = vld [vmem:[#allocation2 + $0x54] sm:$0xff]
        %v367 = vld [vmem:[#allocation2 + $0x5c] sm:$0xf]
        %v368 = vld [vmem:[#allocation2 + $0x60] sm:$0xff]
        %v369 = vld [vmem:[#allocation2 + $0x68] sm:$0xf]
        %v370 = vld [vmem:[#allocation2 + $0x6c] sm:$0xff]
        %v371 = vld [vmem:[#allocation2 + $0x74] sm:$0xf]
        %v372 = vld [vmem:[#allocation2 + $0x78] sm:$0xff]
        %v373 = vld [vmem:[#allocation2 + $0x80] sm:$0xf]
        %v374 = vld [vmem:[#allocation2 + $0x84] sm:$0xff]
        %v375 = vld [vmem:[#allocation2 + $0x8c] sm:$0xf]
        %v376 = vld [vmem:[#allocation2 + $0x90] sm:$0xff]
        %v377 = vld [vmem:[#allocation2 + $0x98] sm:$0xf]
        %v378 = vld [vmem:[#allocation2 + $0x9c] sm:$0xff]
        %v379 = vld [vmem:[#allocation2 + $0xa4] sm:$0xf]
        %v380 = vld [vmem:[#allocation2 + $0xa8] sm:$0xff]
        %v381 = vld [vmem:[#allocation2 + $0xb0] sm:$0xf]
        %v382 = vld [vmem:[#allocation2 + $0xb4] sm:$0xff]
        %v383 = vld [vmem:[#allocation2 + $0xbc] sm:$0xf]
        %v384 = vld [vmem:[%s2] sm:$0x7]
        %v386 = vperm.slane %v384, 0
        %v387 = vperm.slane %v384, 1
        %v388 = vperm.slane %v384, 2
        %v424 = vunpack.c.l.b16 %v352
        %v425 = vunpack.c.h.b16 %v352
        %v426 = vunpack.c.l.b16 %v353
        %v427 = vunpack.c.l.b16 %v354
        %v428 = vunpack.c.h.b16 %v354
        %v429 = vunpack.c.l.b16 %v355
        %v430 = vunpack.c.l.b16 %v356
        %v431 = vunpack.c.h.b16 %v356
        %v432 = vunpack.c.l.b16 %v357
        %v433 = vunpack.c.l.b16 %v358
        %v434 = vunpack.c.h.b16 %v358
        %v435 = vunpack.c.l.b16 %v359
        %v436 = vunpack.c.l.b16 %v360
        %v437 = vunpack.c.h.b16 %v360
        %v438 = vunpack.c.l.b16 %v361
        %v439 = vunpack.c.l.b16 %v362
        %v440 = vunpack.c.h.b16 %v362
        %v441 = vunpack.c.l.b16 %v363
        %v442 = vunpack.c.l.b16 %v364
        %v443 = vunpack.c.h.b16 %v364
        %v444 = vunpack.c.l.b16 %v365
        %v445 = vunpack.c.l.b16 %v366
        %v446 = vunpack.c.h.b16 %v366
        %v447 = vunpack.c.l.b16 %v367
        %v448 = vunpack.c.l.b16 %v368
        %v449 = vunpack.c.h.b16 %v368
        %v450 = vunpack.c.l.b16 %v369
        %v451 = vunpack.c.l.b16 %v370
        %v452 = vunpack.c.h.b16 %v370
        %v453 = vunpack.c.l.b16 %v371
        %v454 = vunpack.c.l.b16 %v372
        %v455 = vunpack.c.h.b16 %v372
        %v456 = vunpack.c.l.b16 %v373
        %v457 = vunpack.c.l.b16 %v374
        %v458 = vunpack.c.h.b16 %v374
        %v459 = vunpack.c.l.b16 %v375
        %v460 = vunpack.c.l.b16 %v376
        %v461 = vunpack.c.h.b16 %v376
        %v462 = vunpack.c.l.b16 %v377
        %v463 = vunpack.c.l.b16 %v378
        %v464 = vunpack.c.h.b16 %v378
        %v465 = vunpack.c.l.b16 %v379
        %v466 = vunpack.c.l.b16 %v380
        %v467 = vunpack.c.h.b16 %v380
        %v468 = vunpack.c.l.b16 %v381
        %v469 = vunpack.c.l.b16 %v382
        %v470 = vunpack.c.h.b16 %v382
        %v471 = vunpack.c.l.b16 %v383
        %v472 = vpack.c.b16 %v427, %v424
        %v473 = vpack.c.b16 %v428, %v425
        %v474 = vpack.c.b16 %v429, %v426
        %v475 = vpack.c.b16 %v433, %v430
        %v476 = vpack.c.b16 %v434, %v431
        %v477 = vpack.c.b16 %v435, %v432
        %v478 = vpack.c.b16 %v439, %v436
        %v479 = vpack.c.b16 %v440, %v437
        %v480 = vpack.c.b16 %v441, %v438
        %v481 = vpack.c.b16 %v445, %v442
        %v482 = vpack.c.b16 %v446, %v443
        %v483 = vpack.c.b16 %v447, %v444
        %v484 = vpack.c.b16 %v451, %v448
        %v485 = vpack.c.b16 %v452, %v449
        %v486 = vpack.c.b16 %v453, %v450
        %v487 = vpack.c.b16 %v457, %v454
        %v488 = vpack.c.b16 %v458, %v455
        %v489 = vpack.c.b16 %v459, %v456
        %v490 = vpack.c.b16 %v463, %v460
        %v491 = vpack.c.b16 %v464, %v461
        %v492 = vpack.c.b16 %v465, %v462
        %v493 = vpack.c.b16 %v469, %v466
        %v494 = vpack.c.b16 %v470, %v467
        %v495 = vpack.c.b16 %v471, %v468
        %520 = vmatpush.bf16.msra.mxu0 %v493
        %521 = vmatpush.bf16.msra.mxu0 %v490
        %522 = vmatpush.bf16.msra.mxu0 %v487
        %523 = vmatpush.bf16.msra.mxu0 %v484
        %524 = vmatpush.bf16.msra.mxu0 %v481
        %525 = vmatpush.bf16.msra.mxu0 %v478
        %526 = vmatpush.bf16.msra.mxu0 %v475
        %527 = vmatpush.bf16.msra.mxu0 %v472
        %528 = vmatmul.bf16.gmra.mxu0 %v351
        %v529 = vpop.f32.mrf.mxu0
        %v530 = vadd.f32 %v386, %v529
        %v531 = vpop.f32.mrf.mxu0
        %532 = vdwg.mxu0
        %533 = vmatpush.bf16.msra.mxu0 %v494
        %534 = vmatpush.bf16.msra.mxu0 %v491
        %535 = vmatpush.bf16.msra.mxu0 %v488
        %536 = vmatpush.bf16.msra.mxu0 %v485
        %537 = vmatpush.bf16.msra.mxu0 %v482
        %538 = vmatpush.bf16.msra.mxu0 %v479
        %539 = vmatpush.bf16.msra.mxu0 %v476
        %540 = vmatpush.bf16.msra.mxu0 %v473
        %541 = vmatmul.bf16.gmra.mxu0 %v351
        %v542 = vpop.f32.mrf.mxu0
        %v543 = vadd.f32 %v387, %v542
        %v544 = vpop.f32.mrf.mxu0
        %545 = vdwg.mxu0
        %546 = vmatpush.bf16.msra.mxu0 %v495
        %547 = vmatpush.bf16.msra.mxu0 %v492
        %548 = vmatpush.bf16.msra.mxu0 %v489
        %549 = vmatpush.bf16.msra.mxu0 %v486
        %550 = vmatpush.bf16.msra.mxu0 %v483
        %551 = vmatpush.bf16.msra.mxu0 %v480
        %552 = vmatpush.bf16.msra.mxu0 %v477
        %553 = vmatpush.bf16.msra.mxu0 %v474
        %554 = vmatmul.bf16.gmra.mxu0 %v351
        %v555 = vpop.f32.mrf.mxu0
        %v556 = vadd.f32 %v388, %v555
        %v557 = vpop.f32.mrf.mxu0
        %558 = vdwg.mxu0
        %v559 = vpack.c.bf16 %v530, %v530
        %v560 = vpack.c.bf16 %v543, %v543
        %v561 = vpack.c.bf16 %v556, %v556
        %v562 = vld [vmem:[%s344] sm:$0x1]
        %vm563 = vcmask 261120
        %v565 = vsel %vm563, %v559, 0
        %v568 = vsel %vm563, %v560, 0
        %570 = vmatpush.bf16.xpose.msra.mxu0 0
        %571 = vmatpush.bf16.xpose.msra.mxu0 0
        %572 = vmatpush.bf16.xpose.msra.mxu0 0
        %573 = vmatpush.bf16.xpose.msra.mxu0 0
        %574 = vmatpush.bf16.xpose.msra.mxu0 0
        %575 = vmatpush.bf16.xpose.msra.mxu0 0
        %576 = vmatpush.bf16.xpose.msra.mxu0 0
        %577 = vmatpush.bf16.xpose.msra.mxu0 %v568
        %578 = vmatmul.bf16.gmra.mxu0 %v565
        %v579 = vpop.f32.mrf.mxu0
        %v580 = vadd.f32 0.0, %v579
        %v581 = vpop.f32.mrf.mxu0
        %582 = vdwg.mxu0
        %v583 = vmul.f32 %v580, 0.17677669
        %v585 = vperm.slane %v562, 0
        %v587 = vadd.f32 %v583, %v585
        %vm588 = vcmask 64512
        %v589 = vsel %vm588, %v587, -inf
        %590 = vmax.xlane.f32.xlu0 %v589
        %v591 = vpop.xlane.xlu0 %590
        %v592 = vsub.f32 %v587, %v591
        %v593 = vmul.f32 %v592, 1.442695
        %v594 = vpow.pop %v593
        %v595 = vsel %vm588, %v594, 0.0
        %596 = vadd.xlane.f32.xlu0 %v595
        %v597 = vpop.xlane.xlu0 %596
        %v598 = vrcp.pop %v597
        %v599 = vmul.f32 %v594, %v598
        %v600 = vpack.c.bf16 %v599, %v599
        %v602 = vsel %vm588, %v600, 0
        %vm604 = vcmask 1043456
        %v606 = vsel %vm604, %v561, 0
        %608 = vmatpush.bf16.msra.mxu0 0
        %609 = vmatpush.bf16.msra.mxu0 0
        %610 = vmatpush.bf16.msra.mxu0 0
        %611 = vmatpush.bf16.msra.mxu0 0
        %612 = vmatpush.bf16.msra.mxu0 0
        %613 = vmatpush.bf16.msra.mxu0 0
        %614 = vmatpush.bf16.msra.mxu0 0
        %615 = vmatpush.bf16.msra.mxu0 %v606
        %616 = vmatmul.bf16.gmra.mxu0 %v602
        %v617 = vpop.f32.mrf.mxu0
        %v618 = vadd.f32 0.0, %v617
        %v619 = vpop.f32.mrf.mxu0
        %620 = vdwg.mxu0
        %v622 = vunpack.c.l.b16 %v559
        %v623 = vpack.c.b16 %v622, %v622
        %624 = vrot.lane.b32.xlu0 %v623, 96
        %v625 = vpop.permute.xlu0 %624
        %v627 = vunpack.c.l.b16 %v560
        %v628 = vpack.c.b16 %v627, %v627
        %629 = vrot.lane.b32.xlu0 %v628, 96
        %v630 = vpop.permute.xlu0 %629
        %v632 = vsel %vm563, %v625, 0
        %v635 = vsel %vm563, %v630, 0
        %637 = vmatpush.bf16.xpose.msra.mxu0 0
        %638 = vmatpush.bf16.xpose.msra.mxu0 0
        %639 = vmatpush.bf16.xpose.msra.mxu0 0
        %640 = vmatpush.bf16.xpose.msra.mxu0 0
        %641 = vmatpush.bf16.xpose.msra.mxu0 0
        %642 = vmatpush.bf16.xpose.msra.mxu0 0
        %643 = vmatpush.bf16.xpose.msra.mxu0 0
        %644 = vmatpush.bf16.xpose.msra.mxu0 %v635
        %645 = vmatmul.bf16.gmra.mxu0 %v632
        %v646 = vpop.f32.mrf.mxu0
        %v647 = vadd.f32 0.0, %v646
        %v648 = vpop.f32.mrf.mxu0
        %649 = vdwg.mxu0
        %v650 = vmul.f32 %v647, 0.17677669
        %v651 = vadd.f32 %v650, %v585
        %v652 = vsel %vm588, %v651, -inf
        %653 = vmax.xlane.f32.xlu0 %v652
        %v654 = vpop.xlane.xlu0 %653
        %v655 = vsub.f32 %v651, %v654
        %v656 = vmul.f32 %v655, 1.442695
        %v657 = vpow.pop %v656
        %v658 = vsel %vm588, %v657, 0.0
        %659 = vadd.xlane.f32.xlu0 %v658
        %v660 = vpop.xlane.xlu0 %659
        %v661 = vrcp.pop %v660
        %v662 = vmul.f32 %v657, %v661
        %v663 = vpack.c.bf16 %v662, %v662
        %v665 = vunpack.c.l.b16 %v561
        %v666 = vpack.c.b16 %v665, %v665
        %667 = vrot.lane.b32.xlu0 %v666, 96
        %v668 = vpop.permute.xlu0 %667
        %v670 = vsel %vm588, %v663, 0
        %v673 = vsel %vm604, %v668, 0
        %675 = vmatpush.bf16.msra.mxu0 0
        %676 = vmatpush.bf16.msra.mxu0 0
        %677 = vmatpush.bf16.msra.mxu0 0
        %678 = vmatpush.bf16.msra.mxu0 0
        %679 = vmatpush.bf16.msra.mxu0 0
        %680 = vmatpush.bf16.msra.mxu0 0
        %681 = vmatpush.bf16.msra.mxu0 0
        %682 = vmatpush.bf16.msra.mxu0 %v673
        %683 = vmatmul.bf16.gmra.mxu0 %v670
        %v684 = vpop.f32.mrf.mxu0
        %v685 = vadd.f32 0.0, %v684
        %v686 = vpop.f32.mrf.mxu0
        %687 = vdwg.mxu0
        %688 = vrot.lane.b32.xlu0 %v623, 64
        %v689 = vpop.permute.xlu0 %688
        %690 = vrot.lane.b32.xlu0 %v628, 64
        %v691 = vpop.permute.xlu0 %690
        %v693 = vsel %vm563, %v689, 0
        %v696 = vsel %vm563, %v691, 0
        %698 = vmatpush.bf16.xpose.msra.mxu0 0
        %699 = vmatpush.bf16.xpose.msra.mxu0 0
        %700 = vmatpush.bf16.xpose.msra.mxu0 0
        %701 = vmatpush.bf16.xpose.msra.mxu0 0
        %702 = vmatpush.bf16.xpose.msra.mxu0 0
        %703 = vmatpush.bf16.xpose.msra.mxu0 0
        %704 = vmatpush.bf16.xpose.msra.mxu0 0
        %705 = vmatpush.bf16.xpose.msra.mxu0 %v696
        %706 = vmatmul.bf16.gmra.mxu0 %v693
        %v707 = vpop.f32.mrf.mxu0
        %v708 = vadd.f32 0.0, %v707
        %v709 = vpop.f32.mrf.mxu0
        %710 = vdwg.mxu0
        %v711 = vmul.f32 %v708, 0.17677669
        %v712 = vadd.f32 %v711, %v585
        %v713 = vsel %vm588, %v712, -inf
        %714 = vmax.xlane.f32.xlu0 %v713
        %v715 = vpop.xlane.xlu0 %714
        %v716 = vsub.f32 %v712, %v715
        %v717 = vmul.f32 %v716, 1.442695
        %v718 = vpow.pop %v717
        %v719 = vsel %vm588, %v718, 0.0
        %720 = vadd.xlane.f32.xlu0 %v719
        %v721 = vpop.xlane.xlu0 %720
        %v722 = vrcp.pop %v721
        %v723 = vmul.f32 %v718, %v722
        %v724 = vpack.c.bf16 %v723, %v723
        %725 = vrot.lane.b32.xlu0 %v666, 64
        %v726 = vpop.permute.xlu0 %725
        %v728 = vsel %vm588, %v724, 0
        %v731 = vsel %vm604, %v726, 0
        %733 = vmatpush.bf16.msra.mxu0 0
        %734 = vmatpush.bf16.msra.mxu0 0
        %735 = vmatpush.bf16.msra.mxu0 0
        %736 = vmatpush.bf16.msra.mxu0 0
        %737 = vmatpush.bf16.msra.mxu0 0
        %738 = vmatpush.bf16.msra.mxu0 0
        %739 = vmatpush.bf16.msra.mxu0 0
        %740 = vmatpush.bf16.msra.mxu0 %v731
        %741 = vmatmul.bf16.gmra.mxu0 %v728
        %v742 = vpop.f32.mrf.mxu0
        %v743 = vadd.f32 0.0, %v742
        %v744 = vpop.f32.mrf.mxu0
        %745 = vdwg.mxu0
        %746 = vrot.lane.b32.xlu0 %v623, 32
        %v747 = vpop.permute.xlu0 %746
        %748 = vrot.lane.b32.xlu0 %v628, 32
        %v749 = vpop.permute.xlu0 %748
        %v751 = vsel %vm563, %v747, 0
        %v754 = vsel %vm563, %v749, 0
        %756 = vmatpush.bf16.xpose.msra.mxu0 0
        %757 = vmatpush.bf16.xpose.msra.mxu0 0
        %758 = vmatpush.bf16.xpose.msra.mxu0 0
        %759 = vmatpush.bf16.xpose.msra.mxu0 0
        %760 = vmatpush.bf16.xpose.msra.mxu0 0
        %761 = vmatpush.bf16.xpose.msra.mxu0 0
        %762 = vmatpush.bf16.xpose.msra.mxu0 0
        %763 = vmatpush.bf16.xpose.msra.mxu0 %v754
        %764 = vmatmul.bf16.gmra.mxu0 %v751
        %v765 = vpop.f32.mrf.mxu0
        %v766 = vadd.f32 0.0, %v765
        %v767 = vpop.f32.mrf.mxu0
        %768 = vdwg.mxu0
        %v769 = vmul.f32 %v766, 0.17677669
        %v770 = vadd.f32 %v769, %v585
        %v771 = vsel %vm588, %v770, -inf
        %772 = vmax.xlane.f32.xlu0 %v771
        %v773 = vpop.xlane.xlu0 %772
        %v774 = vsub.f32 %v770, %v773
        %v775 = vmul.f32 %v774, 1.442695
        %v776 = vpow.pop %v775
        %v777 = vsel %vm588, %v776, 0.0
        %778 = vadd.xlane.f32.xlu0 %v777
        %v779 = vpop.xlane.xlu0 %778
        %v780 = vrcp.pop %v779
        %v781 = vmul.f32 %v776, %v780
        %v782 = vpack.c.bf16 %v781, %v781
        %783 = vrot.lane.b32.xlu0 %v666, 32
        %v784 = vpop.permute.xlu0 %783
        %v786 = vsel %vm588, %v782, 0
        %v789 = vsel %vm604, %v784, 0
        %791 = vmatpush.bf16.msra.mxu0 0
        %792 = vmatpush.bf16.msra.mxu0 0
        %793 = vmatpush.bf16.msra.mxu0 0
        %794 = vmatpush.bf16.msra.mxu0 0
        %795 = vmatpush.bf16.msra.mxu0 0
        %796 = vmatpush.bf16.msra.mxu0 0
        %797 = vmatpush.bf16.msra.mxu0 0
        %798 = vmatpush.bf16.msra.mxu0 %v789
        %799 = vmatmul.bf16.gmra.mxu0 %v786
        %v800 = vpop.f32.mrf.mxu0
        %v801 = vadd.f32 0.0, %v800
        %v802 = vpop.f32.mrf.mxu0
        %803 = vdwg.mxu0
        %805 = vrot.lane.b32.xlu0 %v685, 32
        %v806 = vpop.permute.xlu0 %805
        %809 = vrot.lane.b32.xlu0 %v743, 64
        %v810 = vpop.permute.xlu0 %809
        %813 = vrot.lane.b32.xlu0 %v801, 96
        %v814 = vpop.permute.xlu0 %813
        %v816 = vsel %vm563, %v618, %v806
        %vm817 = vcmask 523264
        %v818 = vsel %vm817, %v816, %v810
        %vm819 = vcmask 785408
        %v820 = vsel %vm819, %v818, %v814
        %v821 = vpack.c.bf16 %v820, %v820
        %v822 = vld [vmem:[#allocation4] sm:$0xf]
        %v823 = vld [vmem:[#allocation4 + $0x4] sm:$0xf]
        %v824 = vld [vmem:[#allocation4 + $0x8] sm:$0xf]
        %v825 = vld [vmem:[#allocation4 + $0xc] sm:$0xf]
        %v826 = vld [vmem:[#allocation4 + $0x10] sm:$0xf]
        %v827 = vld [vmem:[#allocation4 + $0x14] sm:$0xf]
        %v828 = vld [vmem:[#allocation4 + $0x18] sm:$0xf]
        %v829 = vld [vmem:[#allocation4 + $0x1c] sm:$0xf]
        %v830 = vld [vmem:[#allocation4 + $0x20] sm:$0xf]
        %v831 = vld [vmem:[#allocation4 + $0x24] sm:$0xf]
        %v832 = vld [vmem:[#allocation4 + $0x28] sm:$0xf]
        %v833 = vld [vmem:[#allocation4 + $0x2c] sm:$0xf]
        %v834 = vld [vmem:[#allocation4 + $0x30] sm:$0xf]
        %v835 = vld [vmem:[#allocation4 + $0x34] sm:$0xf]
        %v836 = vld [vmem:[#allocation4 + $0x38] sm:$0xf]
        %v837 = vld [vmem:[#allocation4 + $0x3c] sm:$0xf]
        %v838 = vld [vmem:[%s4] sm:$0x1]
        %v840 = vperm.slane %v838, 0
        %v858 = vunpack.c.l.b16 %v822
        %v859 = vunpack.c.l.b16 %v823
        %v860 = vunpack.c.l.b16 %v824
        %v861 = vunpack.c.l.b16 %v825
        %v862 = vunpack.c.l.b16 %v826
        %v863 = vunpack.c.l.b16 %v827
        %v864 = vunpack.c.l.b16 %v828
        %v865 = vunpack.c.l.b16 %v829
        %v866 = vunpack.c.l.b16 %v830
        %v867 = vunpack.c.l.b16 %v831
        %v868 = vunpack.c.l.b16 %v832
        %v869 = vunpack.c.l.b16 %v833
        %v870 = vunpack.c.l.b16 %v834
        %v871 = vunpack.c.l.b16 %v835
        %v872 = vunpack.c.l.b16 %v836
        %v873 = vunpack.c.l.b16 %v837
        %v874 = vpack.c.b16 %v859, %v858
        %v875 = vpack.c.b16 %v861, %v860
        %v876 = vpack.c.b16 %v863, %v862
        %v877 = vpack.c.b16 %v865, %v864
        %v878 = vpack.c.b16 %v867, %v866
        %v879 = vpack.c.b16 %v869, %v868
        %v880 = vpack.c.b16 %v871, %v870
        %v881 = vpack.c.b16 %v873, %v872
        %890 = vmatpush.bf16.msra.mxu0 %v881
        %891 = vmatpush.bf16.msra.mxu0 %v880
        %892 = vmatpush.bf16.msra.mxu0 %v879
        %893 = vmatpush.bf16.msra.mxu0 %v878
        %894 = vmatpush.bf16.msra.mxu0 %v877
        %895 = vmatpush.bf16.msra.mxu0 %v876
        %896 = vmatpush.bf16.msra.mxu0 %v875
        %897 = vmatpush.bf16.msra.mxu0 %v874
        %898 = vmatmul.bf16.gmra.mxu0 %v821
        %v899 = vpop.f32.mrf.mxu0
        %v900 = vadd.f32 %v840, %v899
        %v901 = vpop.f32.mrf.mxu0
        %902 = vdwg.mxu0
        %v903 = vadd.f32 %v900, %v350
        %v904 = vld [vmem:[%s5] sm:$0x1]
        %v905 = vld [vmem:[%s6] sm:$0x1]
        %906 = vadd.xlane.f32.xlu0 %v903
        %v907 = vpop.xlane.xlu0 %906
        %v908 = vrcp.pop 128.0
        %v909 = vmul.f32 128.0, %v908
        %v910 = vsub.f32 1.0, %v909
        %v911 = vmul.f32 %v908, %v910
        %v912 = vadd.f32 %v908, %v911
        %vm913 = vweird.f32 %v908
        %v914 = vsel %vm913, %v908, %v912
        %v915 = vmul.f32 %v907, %v914
        %v916 = vsub.f32 %v903, %v915
        %v917 = vmul.f32 %v916, %v916
        %918 = vadd.xlane.f32.xlu0 %v917
        %v919 = vpop.xlane.xlu0 %918
        %v920 = vmul.f32 %v919, %v914
        %v921 = vadd.f32 %v920, 1e-12
        %v922 = vrsqrt.pop %v921
        %v923 = vmul.f32 %v922, %v921
        %v924 = vmul.f32 %v923, %v922
        %v925 = vmul.f32 0.5, %v924
        %v926 = vsub.f32 1.5, %v925
        %v927 = vmul.f32 %v922, %v926
        %vm928 = vweird.f32 %v921
        %vm929 = vweird.f32 %v922
        %vm930 = vmor %vm928, %vm929
        %v931 = vsel %vm930, %v922, %v927
        %v932 = vmul.f32 %v916, %v931
        %v934 = vperm.slane %v904, 0
        %v936 = vmul.f32 %v932, %v934
        %v938 = vperm.slane %v905, 0
        %v940 = vadd.f32 %v936, %v938
        %941 = vst [vmem:[%s348] sm:$0xff] %v940
        %p942 = scmp.lt.s32.totalorder %s21, 1
        %s943 = scalar_select %p942, %s21, 1
        %s944 = smul.addr %s943, 8
        %s945 = scalar_lea.vmem %s8, %s944
        // Predicated region
        $region61: #{bert_model_forward.6} parent=51 // pred_check
          %p946 = pneg %p217
        $region62: #{bert_model_forward.6} parent=51 // pred_check_branch
          %948 = sbr.rel (%p946) target = $region64
        $region63: #{bert_model_forward.6} parent=51 // pred_region
          _
        $region64: #{bert_model_forward.6} parent=51 // pred_fallthru
          _
      $region52: #{bert_model_forward.6} parent=5 // pred_fallthru
        _
      %p949 = scmp.le.s32.totalorder 2, %s16
      // Predicated region
      $region65: #{bert_model_forward.6} parent=5 // pred_check
        %p950 = pneg %p949
      $region66: #{bert_model_forward.6} parent=5 // pred_check_branch
        %952 = sbr.rel (%p950) target = $region68
      $region67: #{bert_model_forward.6} parent=5 // pred_region
        %s953 = ssub.s32 %s16, 2
        // Predicated region
        $region69: #{bert_model_forward.6} parent=67 // pred_check
          %p954 = pneg %p223
        $region70: #{bert_model_forward.6} parent=67 // pred_check_branch
          %956 = sbr.rel (%p954) target = $region72
        $region71: #{bert_model_forward.6} parent=67 // pred_region
          %p957 = scmp.lt.s32.totalorder %s22, 1
          %s958 = scalar_select %p957, %s22, 1
          %s959 = smul.addr %s958, 8
          %s960 = scalar_lea.vmem %s8, %s959
        $region72: #{bert_model_forward.6} parent=67 // pred_fallthru
          _
      $region68: #{bert_model_forward.6} parent=5 // pred_fallthru
        _
    $region6: #{bert_model_forward.6} parent=1 // loop_footer
      %s20 = sadd.s32 1, %s16
    $region7: #{bert_model_forward.6} parent=1 // loop_footer_branch
      %15 = sbr.rel target = $region3
    $region8: #{bert_model_forward.6} parent=1 // loop_exit
      _
    %961 = vsyncpa [#allocation3], 1
    %s962 = scalar_lea.sflag [#allocation3], 1
    %963 = vsyncpa %s962, 1
    %964 = vsyncpa [#allocation5], 1

</llo_original>
